<compile_context>
chip_gen: v5e
topology: v5e:2x2
jax: 0.10.0
libtpu: 0.0.40
codegen_flags: <defaults>
</compile_context>

<pallas_src>
import jax
import jax.numpy as jnp
from jax.experimental import pallas as pl
from jax.experimental.pallas import tpu as pltpu


def _squeeze_excite(x_ref, w1_ref, b1_ref, w2_ref, b2_ref, o_ref, inv_hw):
    """One AttentionFusion on the current batch element.

    x_ref/o_ref: (1, C, HW) f32 (full spatial extent of this map).
    w1_ref: (C/2, C)   b1_ref: (C/2, 1)   w2_ref: (C, C/2)   b2_ref: (C, 1)
    (PyTorch nn.Linear layout, biases reshaped to columns.)
    """
    x = x_ref[0]                                                   # (C, HW) f32
    # Squeeze: per-channel mean as an MXU matvec (keeps VPU/XLU slots free).
    ones = jnp.ones((x.shape[-1], 1), dtype=jnp.float32)
    m_col = jnp.dot(x, ones, preferred_element_type=jnp.float32) * inv_hw   # (C, 1)
    # Excite: column-form MLP straight on the PyTorch-layout weights.
    h = jnp.dot(w1_ref[...], m_col,
                preferred_element_type=jnp.float32) + b1_ref[...]           # (C/2, 1)
    s_col = jax.nn.sigmoid(
        jnp.dot(w2_ref[...], h,
                preferred_element_type=jnp.float32) + b2_ref[...])          # (C, 1)
    # Scale: lane-dense elementwise multiply and store.
    o_ref[0] = (x * s_col).astype(o_ref.dtype)


def _make_neck_kernel(inv_hws):
    inv_s, inv_m, inv_l = inv_hws

    def kernel(xs_ref, sw1_ref, sb1_ref, sw2_ref, sb2_ref,
               xm_ref, mw1_ref, mb1_ref, mw2_ref, mb2_ref,
               xl_ref, lw1_ref, lb1_ref, lw2_ref, lb2_ref,
               os_ref, om_ref, ol_ref):
        # Same order as the PyTorch forward (large, medium, small); order is
        # irrelevant for semantics since the three scales are independent.
        _squeeze_excite(xl_ref, lw1_ref, lb1_ref, lw2_ref, lb2_ref, ol_ref, inv_l)
        _squeeze_excite(xm_ref, mw1_ref, mb1_ref, mw2_ref, mb2_ref, om_ref, inv_m)
        _squeeze_excite(xs_ref, sw1_ref, sb1_ref, sw2_ref, sb2_ref, os_ref, inv_s)

    return kernel


def attention_neck2(small, medium, large, params):
    """Fused Pallas implementation of AttentionNeck2.forward.

    small/medium/large: (B, C_i, H_i, W_i) float32 NCHW feature maps.
    params["small"|"medium"|"large"] = {"w1": (C/2, C), "b1": (C/2,),
                                        "w2": (C, C/2), "b2": (C,)}  (PyTorch layout)
    Returns (small_out, medium_out, large_out).
    """
    maps = (small, medium, large)
    names = ("small", "medium", "large")
    B = small.shape[0]

    flat_inputs, in_specs, shapes, inv_hws = [], [], [], []
    for x, name in zip(maps, names):
        assert x.ndim == 4 and x.shape[0] == B
        _, C, H, W = x.shape
        assert C % 2 == 0, "AttentionFusion requires an even channel count"
        Ch = C // 2
        HW = H * W
        x2 = x.reshape(B, C, HW)                            # free reshape, no pad

        p = params[name]
        w1 = p["w1"].astype(jnp.float32)                    # (C/2, C)
        b1c = p["b1"].reshape(Ch, 1).astype(jnp.float32)    # (C/2, 1)
        w2 = p["w2"].astype(jnp.float32)                    # (C, C/2)
        b2c = p["b2"].reshape(C, 1).astype(jnp.float32)     # (C, 1)

        flat_inputs += [x2, w1, b1c, w2, b2c]
        in_specs += [
            pl.BlockSpec((1, C, HW), lambda b: (b, 0, 0)),  # full-extent block
            pl.BlockSpec((Ch, C), lambda b: (0, 0)),
            pl.BlockSpec((Ch, 1), lambda b: (0, 0)),
            pl.BlockSpec((C, Ch), lambda b: (0, 0)),
            pl.BlockSpec((C, 1), lambda b: (0, 0)),
        ]
        shapes.append((C, H, W, HW))
        inv_hws.append(1.0 / HW)

    out_shape = tuple(
        jax.ShapeDtypeStruct((B, C, HW), x.dtype)
        for x, (C, _, _, HW) in zip(maps, shapes))
    out_specs = tuple(
        pl.BlockSpec((1, C, HW), lambda b: (b, 0, 0))
        for (C, _, _, HW) in shapes)

    outs = pl.pallas_call(
        _make_neck_kernel(tuple(inv_hws)),
        out_shape=out_shape,
        grid=(B,),
        in_specs=in_specs,
        out_specs=out_specs,
        compiler_params=pltpu.CompilerParams(
            dimension_semantics=("parallel",),
            vmem_limit_bytes=32 * 1024 * 1024),
    )(*flat_inputs)

    return tuple(
        o.reshape(B, C, H, W)                               # free reshape, no slice
        for o, (C, H, W, _) in zip(outs, shapes))


def init_attention_fusion_params(key, channels):
    """Deterministic init mimicking torch.nn.Linear defaults (uniform +-1/sqrt(fan_in))."""
    ch = channels // 2
    k1, k2, k3, k4 = jax.random.split(key, 4)
    lim1 = 1.0 / jnp.sqrt(channels)
    lim2 = 1.0 / jnp.sqrt(ch)
    return {
        "w1": jax.random.uniform(k1, (ch, channels), jnp.float32, -lim1, lim1),
        "b1": jax.random.uniform(k2, (ch,), jnp.float32, -lim1, lim1),
        "w2": jax.random.uniform(k3, (channels, ch), jnp.float32, -lim2, lim2),
        "b2": jax.random.uniform(k4, (channels,), jnp.float32, -lim2, lim2),
    }


def _attention_fusion_ref(x, w1, b1, w2, b2):
    w = jnp.mean(x, axis=(2, 3))            # (B, C)
    w = w @ w1.T + b1                       # (B, C//2)
    w = w @ w2.T + b2                       # (B, C)
    w = jax.nn.sigmoid(w)[:, :, None, None]
    return x * w


if __name__ == "__main__":
    key = jax.random.PRNGKey(0)
    k_s, k_m, k_l, kp_s, kp_m, kp_l = jax.random.split(key, 6)

    # Small shapes consistent with the module: channels_s < channels_m < channels_l,
    # spatial small > medium > large.  Exercises HW % 128 == 0 and HW % 128 != 0.
    B = 2
    C_S, C_M, C_L = 16, 32, 64
    small = jax.random.normal(k_s, (B, C_S, 16, 16), jnp.float32)   # HW = 256
    medium = jax.random.normal(k_m, (B, C_M, 8, 8), jnp.float32)    # HW = 64
    large = jax.random.normal(k_l, (B, C_L, 4, 4), jnp.float32)     # HW = 16

    params = {
        "small": init_attention_fusion_params(kp_s, C_S),
        "medium": init_attention_fusion_params(kp_m, C_M),
        "large": init_attention_fusion_params(kp_l, C_L),
    }

    s_out, m_out, l_out = jax.block_until_ready(
        jax.jit(attention_neck2)(small, medium, large, params))

    # Correctness check against a plain-JAX reference of the PyTorch forward.
    s_ref = _attention_fusion_ref(small, **params["small"])
    m_ref = _attention_fusion_ref(medium, **params["medium"])
    l_ref = _attention_fusion_ref(large, **params["large"])
    assert jnp.allclose(s_out, s_ref, atol=1e-5, rtol=1e-4)
    assert jnp.allclose(m_out, m_ref, atol=1e-5, rtol=1e-4)
    assert jnp.allclose(l_out, l_ref, atol=1e-5, rtol=1e-4)

    print("KERNEL_OK")
</pallas_src>

<mosaic_0001>
module attributes {stable_mosaic.version = 11 : i64} {
  func.func @kernel(%arg0: i32, %arg1: memref<1x16x256xf32, #tpu.memory_space<vmem>>, %arg2: memref<8x16xf32, #tpu.memory_space<vmem>>, %arg3: memref<8x1xf32, #tpu.memory_space<vmem>>, %arg4: memref<16x8xf32, #tpu.memory_space<vmem>>, %arg5: memref<16x1xf32, #tpu.memory_space<vmem>>, %arg6: memref<1x32x64xf32, #tpu.memory_space<vmem>>, %arg7: memref<16x32xf32, #tpu.memory_space<vmem>>, %arg8: memref<16x1xf32, #tpu.memory_space<vmem>>, %arg9: memref<32x16xf32, #tpu.memory_space<vmem>>, %arg10: memref<32x1xf32, #tpu.memory_space<vmem>>, %arg11: memref<1x64x16xf32, #tpu.memory_space<vmem>>, %arg12: memref<32x64xf32, #tpu.memory_space<vmem>>, %arg13: memref<32x1xf32, #tpu.memory_space<vmem>>, %arg14: memref<64x32xf32, #tpu.memory_space<vmem>>, %arg15: memref<64x1xf32, #tpu.memory_space<vmem>>, %arg16: memref<1x16x256xf32, #tpu.memory_space<vmem>>, %arg17: memref<1x32x64xf32, #tpu.memory_space<vmem>>, %arg18: memref<1x64x16xf32, #tpu.memory_space<vmem>>) attributes {dimension_semantics = [#tpu.dimension_semantics<parallel>], iteration_bounds = array<i64: 2>, scalar_prefetch = 0 : i64, scratch_operands = 0 : i64, tpu.core_type = #tpu.core_type<tc>, window_params = [{transform_indices = @transform_0, window_bounds = array<i64: 1, 16, 256>}, {pipeline_mode = #tpu.pipeline_mode<synchronous>, transform_indices = @transform_1, window_bounds = array<i64: 8, 16>}, {pipeline_mode = #tpu.pipeline_mode<synchronous>, transform_indices = @transform_2, window_bounds = array<i64: 8, 1>}, {pipeline_mode = #tpu.pipeline_mode<synchronous>, transform_indices = @transform_3, window_bounds = array<i64: 16, 8>}, {pipeline_mode = #tpu.pipeline_mode<synchronous>, transform_indices = @transform_4, window_bounds = array<i64: 16, 1>}, {transform_indices = @transform_5, window_bounds = array<i64: 1, 32, 64>}, {pipeline_mode = #tpu.pipeline_mode<synchronous>, transform_indices = @transform_6, window_bounds = array<i64: 16, 32>}, {pipeline_mode = #tpu.pipeline_mode<synchronous>, transform_indices = @transform_7, window_bounds = array<i64: 16, 1>}, {pipeline_mode = #tpu.pipeline_mode<synchronous>, transform_indices = @transform_8, window_bounds = array<i64: 32, 16>}, {pipeline_mode = #tpu.pipeline_mode<synchronous>, transform_indices = @transform_9, window_bounds = array<i64: 32, 1>}, {transform_indices = @transform_10, window_bounds = array<i64: 1, 64, 16>}, {pipeline_mode = #tpu.pipeline_mode<synchronous>, transform_indices = @transform_11, window_bounds = array<i64: 32, 64>}, {pipeline_mode = #tpu.pipeline_mode<synchronous>, transform_indices = @transform_12, window_bounds = array<i64: 32, 1>}, {pipeline_mode = #tpu.pipeline_mode<synchronous>, transform_indices = @transform_13, window_bounds = array<i64: 64, 32>}, {pipeline_mode = #tpu.pipeline_mode<synchronous>, transform_indices = @transform_14, window_bounds = array<i64: 64, 1>}, {transform_indices = @transform_15, window_bounds = array<i64: 1, 16, 256>}, {transform_indices = @transform_16, window_bounds = array<i64: 1, 32, 64>}, {transform_indices = @transform_17, window_bounds = array<i64: 1, 64, 16>}]} {
    %c0 = arith.constant 0 : index
    %c0_0 = arith.constant 0 : index
    %c0_1 = arith.constant 0 : index
    %0 = vector.load %arg11[%c0, %c0_0, %c0_1] : memref<1x64x16xf32, #tpu.memory_space<vmem>>, vector<1x64x16xf32>
    %1 = vector.shape_cast %0 : vector<1x64x16xf32> to vector<64x16xf32>
    %cst = arith.constant 1.000000e+00 : f32
    %2 = vector.broadcast %cst : f32 to vector<16x1xf32>
    %cst_2 = arith.constant dense<0.000000e+00> : vector<64x1xf32>
    %3 = tpu.matmul %1, %2, %cst_2 {dimension_numbers = #tpu.dot_dimension_numbers<[1], [0], [0], [1], [0, 0, 1, 1], [], []>} : vector<64x16xf32>, vector<16x1xf32>, vector<64x1xf32> -> vector<64x1xf32>
    %cst_3 = arith.constant 6.250000e-02 : f32
    %4 = vector.broadcast %cst_3 : f32 to vector<64x1xf32>
    %5 = arith.mulf %3, %4 : vector<64x1xf32>
    %c0_4 = arith.constant 0 : index
    %c0_5 = arith.constant 0 : index
    %6 = vector.load %arg12[%c0_4, %c0_5] : memref<32x64xf32, #tpu.memory_space<vmem>>, vector<32x64xf32>
    %cst_6 = arith.constant dense<0.000000e+00> : vector<32x1xf32>
    %7 = tpu.matmul %6, %5, %cst_6 {dimension_numbers = #tpu.dot_dimension_numbers<[1], [0], [0], [1], [0, 0, 1, 1], [], []>} : vector<32x64xf32>, vector<64x1xf32>, vector<32x1xf32> -> vector<32x1xf32>
    %c0_7 = arith.constant 0 : index
    %c0_8 = arith.constant 0 : index
    %8 = vector.load %arg13[%c0_7, %c0_8] : memref<32x1xf32, #tpu.memory_space<vmem>>, vector<32x1xf32>
    %9 = arith.addf %7, %8 : vector<32x1xf32>
    %c0_9 = arith.constant 0 : index
    %c0_10 = arith.constant 0 : index
    %10 = vector.load %arg14[%c0_9, %c0_10] : memref<64x32xf32, #tpu.memory_space<vmem>>, vector<64x32xf32>
    %cst_11 = arith.constant dense<0.000000e+00> : vector<64x1xf32>
    %11 = tpu.matmul %10, %9, %cst_11 {dimension_numbers = #tpu.dot_dimension_numbers<[1], [0], [0], [1], [0, 0, 1, 1], [], []>} : vector<64x32xf32>, vector<32x1xf32>, vector<64x1xf32> -> vector<64x1xf32>
    %c0_12 = arith.constant 0 : index
    %c0_13 = arith.constant 0 : index
    %12 = vector.load %arg15[%c0_12, %c0_13] : memref<64x1xf32, #tpu.memory_space<vmem>>, vector<64x1xf32>
    %13 = arith.addf %11, %12 : vector<64x1xf32>
    %14 = arith.negf %13 : vector<64x1xf32>
    %15 = math.exp %14 : vector<64x1xf32>
    %cst_14 = arith.constant 1.000000e+00 : f32
    %16 = vector.broadcast %cst_14 : f32 to vector<64x1xf32>
    %17 = arith.addf %16, %15 : vector<64x1xf32>
    %18 = arith.divf %16, %17 : vector<64x1xf32>
    %19 = vector.broadcast %18 : vector<64x1xf32> to vector<64x16xf32>
    %20 = arith.mulf %1, %19 : vector<64x16xf32>
    %c0_15 = arith.constant 0 : index
    %c0_16 = arith.constant 0 : index
    %c0_17 = arith.constant 0 : index
    %21 = vector.load %arg18[%c0_15, %c0_16, %c0_17] : memref<1x64x16xf32, #tpu.memory_space<vmem>>, vector<1x64x16xf32>
    %22 = vector.shape_cast %21 : vector<1x64x16xf32> to vector<64x16xf32>
    %23 = vector.shape_cast %20 : vector<64x16xf32> to vector<1x64x16xf32>
    tpu.vector_store %arg18[%c0_15, %c0_16, %c0_17], %23 {strides = array<i32>} : memref<1x64x16xf32, #tpu.memory_space<vmem>>, vector<1x64x16xf32>,
    %c0_18 = arith.constant 0 : index
    %c0_19 = arith.constant 0 : index
    %c0_20 = arith.constant 0 : index
    %24 = vector.load %arg6[%c0_18, %c0_19, %c0_20] : memref<1x32x64xf32, #tpu.memory_space<vmem>>, vector<1x32x64xf32>
    %25 = vector.shape_cast %24 : vector<1x32x64xf32> to vector<32x64xf32>
    %cst_21 = arith.constant 1.000000e+00 : f32
    %26 = vector.broadcast %cst_21 : f32 to vector<64x1xf32>
    %cst_22 = arith.constant dense<0.000000e+00> : vector<32x1xf32>
    %27 = tpu.matmul %25, %26, %cst_22 {dimension_numbers = #tpu.dot_dimension_numbers<[1], [0], [0], [1], [0, 0, 1, 1], [], []>} : vector<32x64xf32>, vector<64x1xf32>, vector<32x1xf32> -> vector<32x1xf32>
    %cst_23 = arith.constant 1.562500e-02 : f32
    %28 = vector.broadcast %cst_23 : f32 to vector<32x1xf32>
    %29 = arith.mulf %27, %28 : vector<32x1xf32>
    %c0_24 = arith.constant 0 : index
    %c0_25 = arith.constant 0 : index
    %30 = vector.load %arg7[%c0_24, %c0_25] : memref<16x32xf32, #tpu.memory_space<vmem>>, vector<16x32xf32>
    %cst_26 = arith.constant dense<0.000000e+00> : vector<16x1xf32>
    %31 = tpu.matmul %30, %29, %cst_26 {dimension_numbers = #tpu.dot_dimension_numbers<[1], [0], [0], [1], [0, 0, 1, 1], [], []>} : vector<16x32xf32>, vector<32x1xf32>, vector<16x1xf32> -> vector<16x1xf32>
    %c0_27 = arith.constant 0 : index
    %c0_28 = arith.constant 0 : index
    %32 = vector.load %arg8[%c0_27, %c0_28] : memref<16x1xf32, #tpu.memory_space<vmem>>, vector<16x1xf32>
    %33 = arith.addf %31, %32 : vector<16x1xf32>
    %c0_29 = arith.constant 0 : index
    %c0_30 = arith.constant 0 : index
    %34 = vector.load %arg9[%c0_29, %c0_30] : memref<32x16xf32, #tpu.memory_space<vmem>>, vector<32x16xf32>
    %cst_31 = arith.constant dense<0.000000e+00> : vector<32x1xf32>
    %35 = tpu.matmul %34, %33, %cst_31 {dimension_numbers = #tpu.dot_dimension_numbers<[1], [0], [0], [1], [0, 0, 1, 1], [], []>} : vector<32x16xf32>, vector<16x1xf32>, vector<32x1xf32> -> vector<32x1xf32>
    %c0_32 = arith.constant 0 : index
    %c0_33 = arith.constant 0 : index
    %36 = vector.load %arg10[%c0_32, %c0_33] : memref<32x1xf32, #tpu.memory_space<vmem>>, vector<32x1xf32>
    %37 = arith.addf %35, %36 : vector<32x1xf32>
    %38 = arith.negf %37 : vector<32x1xf32>
    %39 = math.exp %38 : vector<32x1xf32>
    %cst_34 = arith.constant 1.000000e+00 : f32
    %40 = vector.broadcast %cst_34 : f32 to vector<32x1xf32>
    %41 = arith.addf %40, %39 : vector<32x1xf32>
    %42 = arith.divf %40, %41 : vector<32x1xf32>
    %43 = vector.broadcast %42 : vector<32x1xf32> to vector<32x64xf32>
    %44 = arith.mulf %25, %43 : vector<32x64xf32>
    %c0_35 = arith.constant 0 : index
    %c0_36 = arith.constant 0 : index
    %c0_37 = arith.constant 0 : index
    %45 = vector.load %arg17[%c0_35, %c0_36, %c0_37] : memref<1x32x64xf32, #tpu.memory_space<vmem>>, vector<1x32x64xf32>
    %46 = vector.shape_cast %45 : vector<1x32x64xf32> to vector<32x64xf32>
    %47 = vector.shape_cast %44 : vector<32x64xf32> to vector<1x32x64xf32>
    tpu.vector_store %arg17[%c0_35, %c0_36, %c0_37], %47 {strides = array<i32>} : memref<1x32x64xf32, #tpu.memory_space<vmem>>, vector<1x32x64xf32>,
    %c0_38 = arith.constant 0 : index
    %c0_39 = arith.constant 0 : index
    %c0_40 = arith.constant 0 : index
    %48 = vector.load %arg1[%c0_38, %c0_39, %c0_40] : memref<1x16x256xf32, #tpu.memory_space<vmem>>, vector<1x16x256xf32>
    %49 = vector.shape_cast %48 : vector<1x16x256xf32> to vector<16x256xf32>
    %cst_41 = arith.constant 1.000000e+00 : f32
    %50 = vector.broadcast %cst_41 : f32 to vector<256x1xf32>
    %cst_42 = arith.constant dense<0.000000e+00> : vector<16x1xf32>
    %51 = tpu.matmul %49, %50, %cst_42 {dimension_numbers = #tpu.dot_dimension_numbers<[1], [0], [0], [1], [0, 0, 1, 1], [], []>} : vector<16x256xf32>, vector<256x1xf32>, vector<16x1xf32> -> vector<16x1xf32>
    %cst_43 = arith.constant 3.906250e-03 : f32
    %52 = vector.broadcast %cst_43 : f32 to vector<16x1xf32>
    %53 = arith.mulf %51, %52 : vector<16x1xf32>
    %c0_44 = arith.constant 0 : index
    %c0_45 = arith.constant 0 : index
    %54 = vector.load %arg2[%c0_44, %c0_45] : memref<8x16xf32, #tpu.memory_space<vmem>>, vector<8x16xf32>
    %cst_46 = arith.constant dense<0.000000e+00> : vector<8x1xf32>
    %55 = tpu.matmul %54, %53, %cst_46 {dimension_numbers = #tpu.dot_dimension_numbers<[1], [0], [0], [1], [0, 0, 1, 1], [], []>} : vector<8x16xf32>, vector<16x1xf32>, vector<8x1xf32> -> vector<8x1xf32>
    %c0_47 = arith.constant 0 : index
    %c0_48 = arith.constant 0 : index
    %56 = vector.load %arg3[%c0_47, %c0_48] : memref<8x1xf32, #tpu.memory_space<vmem>>, vector<8x1xf32>
    %57 = arith.addf %55, %56 : vector<8x1xf32>
    %c0_49 = arith.constant 0 : index
    %c0_50 = arith.constant 0 : index
    %58 = vector.load %arg4[%c0_49, %c0_50] : memref<16x8xf32, #tpu.memory_space<vmem>>, vector<16x8xf32>
    %cst_51 = arith.constant dense<0.000000e+00> : vector<16x1xf32>
    %59 = tpu.matmul %58, %57, %cst_51 {dimension_numbers = #tpu.dot_dimension_numbers<[1], [0], [0], [1], [0, 0, 1, 1], [], []>} : vector<16x8xf32>, vector<8x1xf32>, vector<16x1xf32> -> vector<16x1xf32>
    %c0_52 = arith.constant 0 : index
    %c0_53 = arith.constant 0 : index
    %60 = vector.load %arg5[%c0_52, %c0_53] : memref<16x1xf32, #tpu.memory_space<vmem>>, vector<16x1xf32>
    %61 = arith.addf %59, %60 : vector<16x1xf32>
    %62 = arith.negf %61 : vector<16x1xf32>
    %63 = math.exp %62 : vector<16x1xf32>
    %cst_54 = arith.constant 1.000000e+00 : f32
    %64 = vector.broadcast %cst_54 : f32 to vector<16x1xf32>
    %65 = arith.addf %64, %63 : vector<16x1xf32>
    %66 = arith.divf %64, %65 : vector<16x1xf32>
    %67 = vector.broadcast %66 : vector<16x1xf32> to vector<16x256xf32>
    %68 = arith.mulf %49, %67 : vector<16x256xf32>
    %c0_55 = arith.constant 0 : index
    %c0_56 = arith.constant 0 : index
    %c0_57 = arith.constant 0 : index
    %69 = vector.load %arg16[%c0_55, %c0_56, %c0_57] : memref<1x16x256xf32, #tpu.memory_space<vmem>>, vector<1x16x256xf32>
    %70 = vector.shape_cast %69 : vector<1x16x256xf32> to vector<16x256xf32>
    %71 = vector.shape_cast %68 : vector<16x256xf32> to vector<1x16x256xf32>
    tpu.vector_store %arg16[%c0_55, %c0_56, %c0_57], %71 {strides = array<i32>} : memref<1x16x256xf32, #tpu.memory_space<vmem>>, vector<1x16x256xf32>,
    return
  }
  func.func @transform_0(%arg0: i32) -> (i32, i32, i32) {
    %c0_i32 = arith.constant 0 : i32
    %c0_i32_0 = arith.constant 0 : i32
    %c0_i32_1 = arith.constant 0 : i32
    return %arg0, %c0_i32, %c0_i32_0 : i32, i32, i32
  }
  func.func @transform_1(%arg0: i32) -> (i32, i32) {
    %c0_i32 = arith.constant 0 : i32
    %c0_i32_0 = arith.constant 0 : i32
    %c0_i32_1 = arith.constant 0 : i32
    return %c0_i32, %c0_i32_0 : i32, i32
  }
  func.func @transform_2(%arg0: i32) -> (i32, i32) {
    %c0_i32 = arith.constant 0 : i32
    %c0_i32_0 = arith.constant 0 : i32
    %c0_i32_1 = arith.constant 0 : i32
    return %c0_i32, %c0_i32_0 : i32, i32
  }
  func.func @transform_3(%arg0: i32) -> (i32, i32) {
    %c0_i32 = arith.constant 0 : i32
    %c0_i32_0 = arith.constant 0 : i32
    %c0_i32_1 = arith.constant 0 : i32
    return %c0_i32, %c0_i32_0 : i32, i32
  }
  func.func @transform_4(%arg0: i32) -> (i32, i32) {
    %c0_i32 = arith.constant 0 : i32
    %c0_i32_0 = arith.constant 0 : i32
    %c0_i32_1 = arith.constant 0 : i32
    return %c0_i32, %c0_i32_0 : i32, i32
  }
  func.func @transform_5(%arg0: i32) -> (i32, i32, i32) {
    %c0_i32 = arith.constant 0 : i32
    %c0_i32_0 = arith.constant 0 : i32
    %c0_i32_1 = arith.constant 0 : i32
    return %arg0, %c0_i32, %c0_i32_0 : i32, i32, i32
  }
  func.func @transform_6(%arg0: i32) -> (i32, i32) {
    %c0_i32 = arith.constant 0 : i32
    %c0_i32_0 = arith.constant 0 : i32
    %c0_i32_1 = arith.constant 0 : i32
    return %c0_i32, %c0_i32_0 : i32, i32
  }
  func.func @transform_7(%arg0: i32) -> (i32, i32) {
    %c0_i32 = arith.constant 0 : i32
    %c0_i32_0 = arith.constant 0 : i32
    %c0_i32_1 = arith.constant 0 : i32
    return %c0_i32, %c0_i32_0 : i32, i32
  }
  func.func @transform_8(%arg0: i32) -> (i32, i32) {
    %c0_i32 = arith.constant 0 : i32
    %c0_i32_0 = arith.constant 0 : i32
    %c0_i32_1 = arith.constant 0 : i32
    return %c0_i32, %c0_i32_0 : i32, i32
  }
  func.func @transform_9(%arg0: i32) -> (i32, i32) {
    %c0_i32 = arith.constant 0 : i32
    %c0_i32_0 = arith.constant 0 : i32
    %c0_i32_1 = arith.constant 0 : i32
    return %c0_i32, %c0_i32_0 : i32, i32
  }
  func.func @transform_10(%arg0: i32) -> (i32, i32, i32) {
    %c0_i32 = arith.constant 0 : i32
    %c0_i32_0 = arith.constant 0 : i32
    %c0_i32_1 = arith.constant 0 : i32
    return %arg0, %c0_i32, %c0_i32_0 : i32, i32, i32
  }
  func.func @transform_11(%arg0: i32) -> (i32, i32) {
    %c0_i32 = arith.constant 0 : i32
    %c0_i32_0 = arith.constant 0 : i32
    %c0_i32_1 = arith.constant 0 : i32
    return %c0_i32, %c0_i32_0 : i32, i32
  }
  func.func @transform_12(%arg0: i32) -> (i32, i32) {
    %c0_i32 = arith.constant 0 : i32
    %c0_i32_0 = arith.constant 0 : i32
    %c0_i32_1 = arith.constant 0 : i32
    return %c0_i32, %c0_i32_0 : i32, i32
  }
  func.func @transform_13(%arg0: i32) -> (i32, i32) {
    %c0_i32 = arith.constant 0 : i32
    %c0_i32_0 = arith.constant 0 : i32
    %c0_i32_1 = arith.constant 0 : i32
    return %c0_i32, %c0_i32_0 : i32, i32
  }
  func.func @transform_14(%arg0: i32) -> (i32, i32) {
    %c0_i32 = arith.constant 0 : i32
    %c0_i32_0 = arith.constant 0 : i32
    %c0_i32_1 = arith.constant 0 : i32
    return %c0_i32, %c0_i32_0 : i32, i32
  }
  func.func @transform_15(%arg0: i32) -> (i32, i32, i32) {
    %c0_i32 = arith.constant 0 : i32
    %c0_i32_0 = arith.constant 0 : i32
    %c0_i32_1 = arith.constant 0 : i32
    return %arg0, %c0_i32, %c0_i32_0 : i32, i32, i32
  }
  func.func @transform_16(%arg0: i32) -> (i32, i32, i32) {
    %c0_i32 = arith.constant 0 : i32
    %c0_i32_0 = arith.constant 0 : i32
    %c0_i32_1 = arith.constant 0 : i32
    return %arg0, %c0_i32, %c0_i32_0 : i32, i32, i32
  }
  func.func @transform_17(%arg0: i32) -> (i32, i32, i32) {
    %c0_i32 = arith.constant 0 : i32
    %c0_i32_0 = arith.constant 0 : i32
    %c0_i32_1 = arith.constant 0 : i32
    return %arg0, %c0_i32, %c0_i32_0 : i32, i32, i32
  }
}

</mosaic_0001>

<llo_original>
// kernel: attention_neck2.1
$region0: #{attention_neck2.1}
  #allocation0 [shape = 'u32[]', space=smem, size = 0x4, offset = 0x4, fixed_abs, tag = 'smem constant byte address 0x4 - core index']
  #allocation1 [shape = 'u32[72,128]{1,0:T(1,128)}', space=vmem, size = 0x9000, scoped, tag = 'internal scratch']
  %s0 = inlined_call_operand.vmem [shape: f32[2,16,256], index: 0, kind: input, shape index: {}]
  %s1 = inlined_call_operand.vmem [shape: f32[8,16], index: 1, kind: input, shape index: {}]
  %s2 = inlined_call_operand.vmem [shape: f32[8,1], index: 2, kind: input, shape index: {}]
  %s3 = inlined_call_operand.vmem [shape: f32[16,8], index: 3, kind: input, shape index: {}]
  %s4 = inlined_call_operand.vmem [shape: f32[16,1], index: 4, kind: input, shape index: {}]
  %s5 = inlined_call_operand.vmem [shape: f32[2,32,64], index: 5, kind: input, shape index: {}]
  %s6 = inlined_call_operand.vmem [shape: f32[16,32], index: 6, kind: input, shape index: {}]
  %s7 = inlined_call_operand.vmem [shape: f32[16,1], index: 7, kind: input, shape index: {}]
  %s8 = inlined_call_operand.vmem [shape: f32[32,16], index: 8, kind: input, shape index: {}]
  %s9 = inlined_call_operand.vmem [shape: f32[32,1], index: 9, kind: input, shape index: {}]
  %s10 = inlined_call_operand.vmem [shape: f32[2,64,16], index: 10, kind: input, shape index: {}]
  %s11 = inlined_call_operand.vmem [shape: f32[32,64], index: 11, kind: input, shape index: {}]
  %s12 = inlined_call_operand.vmem [shape: f32[32,1], index: 12, kind: input, shape index: {}]
  %s13 = inlined_call_operand.vmem [shape: f32[64,32], index: 13, kind: input, shape index: {}]
  %s14 = inlined_call_operand.vmem [shape: f32[64,1], index: 14, kind: input, shape index: {}]
  %s15 = inlined_call_operand.vmem [shape: f32[2,16,256], index: 15, kind: output, shape index: {0}]
  %s16 = inlined_call_operand.vmem [shape: f32[2,32,64], index: 16, kind: output, shape index: {1}]
  %s17 = inlined_call_operand.vmem [shape: f32[2,64,16], index: 17, kind: output, shape index: {2}]
  %18 = xla_tuple %s15, %s16, %s17
  %s19 = sld [smem:[#allocation0]]
  $region109: #{attention_neck2.1} parent=0
    _
  %s21 = ssub.s32 1, %s19
  %s22 = scalar_select 0, %s21, %s19
  loop: start=0, step=1, limit=4
  $region2: #{attention_neck2.1} parent=0 // loop_pre_header
    _
  $region3: #{attention_neck2.1} parent=0 // loop_header
    %s24 = sphi 0, %s28
    %p25 = scmp.ge.s32.totalorder %s24, 4
    %s34 = sphi 0, %s36
    %s37 = sphi 0, %s34
    %s38 = sphi 0, %s37
    %s54 = sphi 0, %s38
    %s58 = sphi 0, %s58
    %s60 = sphi 0, %s58
    %s61 = sphi 0, %s60
    %s75 = sphi 0, %s61
    %s79 = sphi 0, %s79
    %s81 = sphi 0, %s79
    %s82 = sphi 0, %s81
    %s96 = sphi 0, %s82
    %s100 = sphi 0, %s100
    %s102 = sphi 0, %s100
    %s103 = sphi 0, %s102
    %s117 = sphi 0, %s103
    %s121 = sphi 0, %s121
    %s123 = sphi 0, %s121
    %s124 = sphi 0, %s123
    %s138 = sphi 0, %s124
    %s144 = sphi 0, %s146
    %s147 = sphi 0, %s144
    %s148 = sphi 0, %s147
    %s164 = sphi 0, %s148
    %s168 = sphi 0, %s168
    %s170 = sphi 0, %s168
    %s171 = sphi 0, %s170
    %s185 = sphi 0, %s171
    %s189 = sphi 0, %s189
    %s191 = sphi 0, %s189
    %s192 = sphi 0, %s191
    %s206 = sphi 0, %s192
    %s210 = sphi 0, %s210
    %s212 = sphi 0, %s210
    %s213 = sphi 0, %s212
    %s227 = sphi 0, %s213
    %s231 = sphi 0, %s231
    %s233 = sphi 0, %s231
    %s234 = sphi 0, %s233
    %s248 = sphi 0, %s234
    %s254 = sphi 0, %s256
    %s257 = sphi 0, %s254
    %s258 = sphi 0, %s257
    %s274 = sphi 0, %s258
    %s278 = sphi 0, %s278
    %s280 = sphi 0, %s278
    %s281 = sphi 0, %s280
    %s295 = sphi 0, %s281
    %s299 = sphi 0, %s299
    %s301 = sphi 0, %s299
    %s302 = sphi 0, %s301
    %s316 = sphi 0, %s302
    %s320 = sphi 0, %s320
    %s322 = sphi 0, %s320
    %s323 = sphi 0, %s322
    %s337 = sphi 0, %s323
    %s341 = sphi 0, %s341
    %s343 = sphi 0, %s341
    %s344 = sphi 0, %s343
    %s358 = sphi 0, %s344
    %s364 = sphi 0, %s366
    %s367 = sphi 0, %s364
    %s368 = sphi 0, %s367
    %s384 = sphi 0, %s368
    %s390 = sphi 0, %s392
    %s393 = sphi 0, %s390
    %s394 = sphi 0, %s393
    %s410 = sphi 0, %s394
    %s416 = sphi 0, %s418
    %s419 = sphi 0, %s416
    %s420 = sphi 0, %s419
    %s436 = sphi 0, %s420
  $region4: #{attention_neck2.1} parent=0 // loop_header_branch
    %27 = sbr.rel (%p25) target = $region8
  $region5: #{attention_neck2.1} parent=0 // loop_body
    %s29 = ssub.s32 %s24, 1
    %s30 = ssub.s32 %s24, 2
    %s31 = sadd.s32 %s24, 1
    %s32 = ssub.s32 %s24, %s31
    %p33 = scmp.eq.s32.totalorder %s32, 0
    %s35 = sadd.s32 %s34, 1
    %s36 = scalar_select %p33, %s34, %s35
    %p39 = pneg %p33
    %p40 = scmp.eq.s32.totalorder %s24, 1
    %p41 = por %p39, %p40
    %p42 = scmp.ne.s32.totalorder %s34, %s37
    %p43 = scmp.eq.s32.totalorder %s24, 0
    %p44 = por %p42, %p43
    %p45 = scmp.ne.s32.totalorder %s34, %s37
    %p46 = scmp.eq.s32.totalorder %s29, 1
    %p47 = por %p45, %p46
    %p48 = scmp.ne.s32.totalorder %s37, %s38
    %p49 = scmp.eq.s32.totalorder %s29, 0
    %p50 = por %p48, %p49
    %p51 = scmp.ne.s32.totalorder %s37, %s38
    %p52 = scmp.eq.s32.totalorder %s30, 1
    %p53 = por %p51, %p52
    %p55 = scmp.ne.s32.totalorder %s38, %s54
    %p56 = scmp.eq.s32.totalorder %s30, 0
    %p57 = por %p55, %p56
    %s59 = sadd.s32 %s58, 1
    %p62 = scmp.eq.s32.totalorder %s24, 1
    %p63 = scmp.ne.s32.totalorder %s58, %s60
    %p64 = scmp.eq.s32.totalorder %s24, 0
    %p65 = por %p63, %p64
    %p66 = scmp.ne.s32.totalorder %s58, %s60
    %p67 = scmp.eq.s32.totalorder %s29, 1
    %p68 = por %p66, %p67
    %p69 = scmp.ne.s32.totalorder %s60, %s61
    %p70 = scmp.eq.s32.totalorder %s29, 0
    %p71 = por %p69, %p70
    %p72 = scmp.ne.s32.totalorder %s60, %s61
    %p73 = scmp.eq.s32.totalorder %s30, 1
    %p74 = por %p72, %p73
    %p76 = scmp.ne.s32.totalorder %s61, %s75
    %p77 = scmp.eq.s32.totalorder %s30, 0
    %p78 = por %p76, %p77
    %s80 = sadd.s32 %s79, 1
    %p83 = scmp.eq.s32.totalorder %s24, 1
    %p84 = scmp.ne.s32.totalorder %s79, %s81
    %p85 = scmp.eq.s32.totalorder %s24, 0
    %p86 = por %p84, %p85
    %p87 = scmp.ne.s32.totalorder %s79, %s81
    %p88 = scmp.eq.s32.totalorder %s29, 1
    %p89 = por %p87, %p88
    %p90 = scmp.ne.s32.totalorder %s81, %s82
    %p91 = scmp.eq.s32.totalorder %s29, 0
    %p92 = por %p90, %p91
    %p93 = scmp.ne.s32.totalorder %s81, %s82
    %p94 = scmp.eq.s32.totalorder %s30, 1
    %p95 = por %p93, %p94
    %p97 = scmp.ne.s32.totalorder %s82, %s96
    %p98 = scmp.eq.s32.totalorder %s30, 0
    %p99 = por %p97, %p98
    %s101 = sadd.s32 %s100, 1
    %p104 = scmp.eq.s32.totalorder %s24, 1
    %p105 = scmp.ne.s32.totalorder %s100, %s102
    %p106 = scmp.eq.s32.totalorder %s24, 0
    %p107 = por %p105, %p106
    %p108 = scmp.ne.s32.totalorder %s100, %s102
    %p109 = scmp.eq.s32.totalorder %s29, 1
    %p110 = por %p108, %p109
    %p111 = scmp.ne.s32.totalorder %s102, %s103
    %p112 = scmp.eq.s32.totalorder %s29, 0
    %p113 = por %p111, %p112
    %p114 = scmp.ne.s32.totalorder %s102, %s103
    %p115 = scmp.eq.s32.totalorder %s30, 1
    %p116 = por %p114, %p115
    %p118 = scmp.ne.s32.totalorder %s103, %s117
    %p119 = scmp.eq.s32.totalorder %s30, 0
    %p120 = por %p118, %p119
    %s122 = sadd.s32 %s121, 1
    %p125 = scmp.eq.s32.totalorder %s24, 1
    %p126 = scmp.ne.s32.totalorder %s121, %s123
    %p127 = scmp.eq.s32.totalorder %s24, 0
    %p128 = por %p126, %p127
    %p129 = scmp.ne.s32.totalorder %s121, %s123
    %p130 = scmp.eq.s32.totalorder %s29, 1
    %p131 = por %p129, %p130
    %p132 = scmp.ne.s32.totalorder %s123, %s124
    %p133 = scmp.eq.s32.totalorder %s29, 0
    %p134 = por %p132, %p133
    %p135 = scmp.ne.s32.totalorder %s123, %s124
    %p136 = scmp.eq.s32.totalorder %s30, 1
    %p137 = por %p135, %p136
    %p139 = scmp.ne.s32.totalorder %s124, %s138
    %p140 = scmp.eq.s32.totalorder %s30, 0
    %p141 = por %p139, %p140
    %s142 = ssub.s32 %s24, %s31
    %p143 = scmp.eq.s32.totalorder %s142, 0
    %s145 = sadd.s32 %s144, 1
    %s146 = scalar_select %p143, %s144, %s145
    %p149 = pneg %p143
    %p150 = scmp.eq.s32.totalorder %s24, 1
    %p151 = por %p149, %p150
    %p152 = scmp.ne.s32.totalorder %s144, %s147
    %p153 = scmp.eq.s32.totalorder %s24, 0
    %p154 = por %p152, %p153
    %p155 = scmp.ne.s32.totalorder %s144, %s147
    %p156 = scmp.eq.s32.totalorder %s29, 1
    %p157 = por %p155, %p156
    %p158 = scmp.ne.s32.totalorder %s147, %s148
    %p159 = scmp.eq.s32.totalorder %s29, 0
    %p160 = por %p158, %p159
    %p161 = scmp.ne.s32.totalorder %s147, %s148
    %p162 = scmp.eq.s32.totalorder %s30, 1
    %p163 = por %p161, %p162
    %p165 = scmp.ne.s32.totalorder %s148, %s164
    %p166 = scmp.eq.s32.totalorder %s30, 0
    %p167 = por %p165, %p166
    %s169 = sadd.s32 %s168, 1
    %p172 = scmp.eq.s32.totalorder %s24, 1
    %p173 = scmp.ne.s32.totalorder %s168, %s170
    %p174 = scmp.eq.s32.totalorder %s24, 0
    %p175 = por %p173, %p174
    %p176 = scmp.ne.s32.totalorder %s168, %s170
    %p177 = scmp.eq.s32.totalorder %s29, 1
    %p178 = por %p176, %p177
    %p179 = scmp.ne.s32.totalorder %s170, %s171
    %p180 = scmp.eq.s32.totalorder %s29, 0
    %p181 = por %p179, %p180
    %p182 = scmp.ne.s32.totalorder %s170, %s171
    %p183 = scmp.eq.s32.totalorder %s30, 1
    %p184 = por %p182, %p183
    %p186 = scmp.ne.s32.totalorder %s171, %s185
    %p187 = scmp.eq.s32.totalorder %s30, 0
    %p188 = por %p186, %p187
    %s190 = sadd.s32 %s189, 1
    %p193 = scmp.eq.s32.totalorder %s24, 1
    %p194 = scmp.ne.s32.totalorder %s189, %s191
    %p195 = scmp.eq.s32.totalorder %s24, 0
    %p196 = por %p194, %p195
    %p197 = scmp.ne.s32.totalorder %s189, %s191
    %p198 = scmp.eq.s32.totalorder %s29, 1
    %p199 = por %p197, %p198
    %p200 = scmp.ne.s32.totalorder %s191, %s192
    %p201 = scmp.eq.s32.totalorder %s29, 0
    %p202 = por %p200, %p201
    %p203 = scmp.ne.s32.totalorder %s191, %s192
    %p204 = scmp.eq.s32.totalorder %s30, 1
    %p205 = por %p203, %p204
    %p207 = scmp.ne.s32.totalorder %s192, %s206
    %p208 = scmp.eq.s32.totalorder %s30, 0
    %p209 = por %p207, %p208
    %s211 = sadd.s32 %s210, 1
    %p214 = scmp.eq.s32.totalorder %s24, 1
    %p215 = scmp.ne.s32.totalorder %s210, %s212
    %p216 = scmp.eq.s32.totalorder %s24, 0
    %p217 = por %p215, %p216
    %p218 = scmp.ne.s32.totalorder %s210, %s212
    %p219 = scmp.eq.s32.totalorder %s29, 1
    %p220 = por %p218, %p219
    %p221 = scmp.ne.s32.totalorder %s212, %s213
    %p222 = scmp.eq.s32.totalorder %s29, 0
    %p223 = por %p221, %p222
    %p224 = scmp.ne.s32.totalorder %s212, %s213
    %p225 = scmp.eq.s32.totalorder %s30, 1
    %p226 = por %p224, %p225
    %p228 = scmp.ne.s32.totalorder %s213, %s227
    %p229 = scmp.eq.s32.totalorder %s30, 0
    %p230 = por %p228, %p229
    %s232 = sadd.s32 %s231, 1
    %p235 = scmp.eq.s32.totalorder %s24, 1
    %p236 = scmp.ne.s32.totalorder %s231, %s233
    %p237 = scmp.eq.s32.totalorder %s24, 0
    %p238 = por %p236, %p237
    %p239 = scmp.ne.s32.totalorder %s231, %s233
    %p240 = scmp.eq.s32.totalorder %s29, 1
    %p241 = por %p239, %p240
    %p242 = scmp.ne.s32.totalorder %s233, %s234
    %p243 = scmp.eq.s32.totalorder %s29, 0
    %p244 = por %p242, %p243
    %p245 = scmp.ne.s32.totalorder %s233, %s234
    %p246 = scmp.eq.s32.totalorder %s30, 1
    %p247 = por %p245, %p246
    %p249 = scmp.ne.s32.totalorder %s234, %s248
    %p250 = scmp.eq.s32.totalorder %s30, 0
    %p251 = por %p249, %p250
    %s252 = ssub.s32 %s24, %s31
    %p253 = scmp.eq.s32.totalorder %s252, 0
    %s255 = sadd.s32 %s254, 1
    %s256 = scalar_select %p253, %s254, %s255
    %p259 = pneg %p253
    %p260 = scmp.eq.s32.totalorder %s24, 1
    %p261 = por %p259, %p260
    %p262 = scmp.ne.s32.totalorder %s254, %s257
    %p263 = scmp.eq.s32.totalorder %s24, 0
    %p264 = por %p262, %p263
    %p265 = scmp.ne.s32.totalorder %s254, %s257
    %p266 = scmp.eq.s32.totalorder %s29, 1
    %p267 = por %p265, %p266
    %p268 = scmp.ne.s32.totalorder %s257, %s258
    %p269 = scmp.eq.s32.totalorder %s29, 0
    %p270 = por %p268, %p269
    %p271 = scmp.ne.s32.totalorder %s257, %s258
    %p272 = scmp.eq.s32.totalorder %s30, 1
    %p273 = por %p271, %p272
    %p275 = scmp.ne.s32.totalorder %s258, %s274
    %p276 = scmp.eq.s32.totalorder %s30, 0
    %p277 = por %p275, %p276
    %s279 = sadd.s32 %s278, 1
    %p282 = scmp.eq.s32.totalorder %s24, 1
    %p283 = scmp.ne.s32.totalorder %s278, %s280
    %p284 = scmp.eq.s32.totalorder %s24, 0
    %p285 = por %p283, %p284
    %p286 = scmp.ne.s32.totalorder %s278, %s280
    %p287 = scmp.eq.s32.totalorder %s29, 1
    %p288 = por %p286, %p287
    %p289 = scmp.ne.s32.totalorder %s280, %s281
    %p290 = scmp.eq.s32.totalorder %s29, 0
    %p291 = por %p289, %p290
    %p292 = scmp.ne.s32.totalorder %s280, %s281
    %p293 = scmp.eq.s32.totalorder %s30, 1
    %p294 = por %p292, %p293
    %p296 = scmp.ne.s32.totalorder %s281, %s295
    %p297 = scmp.eq.s32.totalorder %s30, 0
    %p298 = por %p296, %p297
    %s300 = sadd.s32 %s299, 1
    %p303 = scmp.eq.s32.totalorder %s24, 1
    %p304 = scmp.ne.s32.totalorder %s299, %s301
    %p305 = scmp.eq.s32.totalorder %s24, 0
    %p306 = por %p304, %p305
    %p307 = scmp.ne.s32.totalorder %s299, %s301
    %p308 = scmp.eq.s32.totalorder %s29, 1
    %p309 = por %p307, %p308
    %p310 = scmp.ne.s32.totalorder %s301, %s302
    %p311 = scmp.eq.s32.totalorder %s29, 0
    %p312 = por %p310, %p311
    %p313 = scmp.ne.s32.totalorder %s301, %s302
    %p314 = scmp.eq.s32.totalorder %s30, 1
    %p315 = por %p313, %p314
    %p317 = scmp.ne.s32.totalorder %s302, %s316
    %p318 = scmp.eq.s32.totalorder %s30, 0
    %p319 = por %p317, %p318
    %s321 = sadd.s32 %s320, 1
    %p324 = scmp.eq.s32.totalorder %s24, 1
    %p325 = scmp.ne.s32.totalorder %s320, %s322
    %p326 = scmp.eq.s32.totalorder %s24, 0
    %p327 = por %p325, %p326
    %p328 = scmp.ne.s32.totalorder %s320, %s322
    %p329 = scmp.eq.s32.totalorder %s29, 1
    %p330 = por %p328, %p329
    %p331 = scmp.ne.s32.totalorder %s322, %s323
    %p332 = scmp.eq.s32.totalorder %s29, 0
    %p333 = por %p331, %p332
    %p334 = scmp.ne.s32.totalorder %s322, %s323
    %p335 = scmp.eq.s32.totalorder %s30, 1
    %p336 = por %p334, %p335
    %p338 = scmp.ne.s32.totalorder %s323, %s337
    %p339 = scmp.eq.s32.totalorder %s30, 0
    %p340 = por %p338, %p339
    %s342 = sadd.s32 %s341, 1
    %p345 = scmp.eq.s32.totalorder %s24, 1
    %p346 = scmp.ne.s32.totalorder %s341, %s343
    %p347 = scmp.eq.s32.totalorder %s24, 0
    %p348 = por %p346, %p347
    %p349 = scmp.ne.s32.totalorder %s341, %s343
    %p350 = scmp.eq.s32.totalorder %s29, 1
    %p351 = por %p349, %p350
    %p352 = scmp.ne.s32.totalorder %s343, %s344
    %p353 = scmp.eq.s32.totalorder %s29, 0
    %p354 = por %p352, %p353
    %p355 = scmp.ne.s32.totalorder %s343, %s344
    %p356 = scmp.eq.s32.totalorder %s30, 1
    %p357 = por %p355, %p356
    %p359 = scmp.ne.s32.totalorder %s344, %s358
    %p360 = scmp.eq.s32.totalorder %s30, 0
    %p361 = por %p359, %p360
    %s362 = ssub.s32 %s24, %s31
    %p363 = scmp.eq.s32.totalorder %s362, 0
    %s365 = sadd.s32 %s364, 1
    %s366 = scalar_select %p363, %s364, %s365
    %p369 = pneg %p363
    %p370 = scmp.eq.s32.totalorder %s24, 1
    %p371 = por %p369, %p370
    %p372 = scmp.ne.s32.totalorder %s364, %s367
    %p373 = scmp.eq.s32.totalorder %s24, 0
    %p374 = por %p372, %p373
    %p375 = scmp.ne.s32.totalorder %s364, %s367
    %p376 = scmp.eq.s32.totalorder %s29, 1
    %p377 = por %p375, %p376
    %p378 = scmp.ne.s32.totalorder %s367, %s368
    %p379 = scmp.eq.s32.totalorder %s29, 0
    %p380 = por %p378, %p379
    %p381 = scmp.ne.s32.totalorder %s367, %s368
    %p382 = scmp.eq.s32.totalorder %s30, 1
    %p383 = por %p381, %p382
    %p385 = scmp.ne.s32.totalorder %s368, %s384
    %p386 = scmp.eq.s32.totalorder %s30, 0
    %p387 = por %p385, %p386
    %s388 = ssub.s32 %s24, %s31
    %p389 = scmp.eq.s32.totalorder %s388, 0
    %s391 = sadd.s32 %s390, 1
    %s392 = scalar_select %p389, %s390, %s391
    %p395 = pneg %p389
    %p396 = scmp.eq.s32.totalorder %s24, 1
    %p397 = por %p395, %p396
    %p398 = scmp.ne.s32.totalorder %s390, %s393
    %p399 = scmp.eq.s32.totalorder %s24, 0
    %p400 = por %p398, %p399
    %p401 = scmp.ne.s32.totalorder %s390, %s393
    %p402 = scmp.eq.s32.totalorder %s29, 1
    %p403 = por %p401, %p402
    %p404 = scmp.ne.s32.totalorder %s393, %s394
    %p405 = scmp.eq.s32.totalorder %s29, 0
    %p406 = por %p404, %p405
    %p407 = scmp.ne.s32.totalorder %s393, %s394
    %p408 = scmp.eq.s32.totalorder %s30, 1
    %p409 = por %p407, %p408
    %p411 = scmp.ne.s32.totalorder %s394, %s410
    %p412 = scmp.eq.s32.totalorder %s30, 0
    %p413 = por %p411, %p412
    %s414 = ssub.s32 %s24, %s31
    %p415 = scmp.eq.s32.totalorder %s414, 0
    %s417 = sadd.s32 %s416, 1
    %s418 = scalar_select %p415, %s416, %s417
    %p421 = pneg %p415
    %p422 = scmp.eq.s32.totalorder %s24, 1
    %p423 = por %p421, %p422
    %p424 = scmp.ne.s32.totalorder %s416, %s419
    %p425 = scmp.eq.s32.totalorder %s24, 0
    %p426 = por %p424, %p425
    %p427 = scmp.ne.s32.totalorder %s416, %s419
    %p428 = scmp.eq.s32.totalorder %s29, 1
    %p429 = por %p427, %p428
    %p430 = scmp.ne.s32.totalorder %s419, %s420
    %p431 = scmp.eq.s32.totalorder %s29, 0
    %p432 = por %p430, %p431
    %p433 = scmp.ne.s32.totalorder %s419, %s420
    %p434 = scmp.eq.s32.totalorder %s30, 1
    %p435 = por %p433, %p434
    %p437 = scmp.ne.s32.totalorder %s420, %s436
    %p438 = scmp.eq.s32.totalorder %s30, 0
    %p439 = por %p437, %p438
    %p440 = scmp.le.s32.totalorder 1, %s24
    %p441 = scmp.lt.s32.totalorder %s24, 3
    %p442 = pnand %p440, %p441
    %p443 = pneg %p442
    // Predicated region
    $region9: #{attention_neck2.1} parent=5 // pred_check
      _
    $region10: #{attention_neck2.1} parent=5 // pred_check_branch
      %445 = sbr.rel (%p442) target = $region12
    $region11: #{attention_neck2.1} parent=5 // pred_region
      %s446 = ssub.s32 %s24, 1
      // Predicated region
      $region13: #{attention_neck2.1} parent=11 // pred_check
        %p447 = pneg %p71
      $region14: #{attention_neck2.1} parent=11 // pred_check_branch
        %449 = sbr.rel (%p447) target = $region16
      $region15: #{attention_neck2.1} parent=11 // pred_region
        _
      $region16: #{attention_neck2.1} parent=11 // pred_fallthru
        _
      // Predicated region
      $region17: #{attention_neck2.1} parent=11 // pred_check
        %p450 = pneg %p92
      $region18: #{attention_neck2.1} parent=11 // pred_check_branch
        %452 = sbr.rel (%p450) target = $region20
      $region19: #{attention_neck2.1} parent=11 // pred_region
        _
      $region20: #{attention_neck2.1} parent=11 // pred_fallthru
        _
      // Predicated region
      $region21: #{attention_neck2.1} parent=11 // pred_check
        %p453 = pneg %p113
      $region22: #{attention_neck2.1} parent=11 // pred_check_branch
        %455 = sbr.rel (%p453) target = $region24
      $region23: #{attention_neck2.1} parent=11 // pred_region
        _
      $region24: #{attention_neck2.1} parent=11 // pred_fallthru
        _
      // Predicated region
      $region25: #{attention_neck2.1} parent=11 // pred_check
        %p456 = pneg %p134
      $region26: #{attention_neck2.1} parent=11 // pred_check_branch
        %458 = sbr.rel (%p456) target = $region28
      $region27: #{attention_neck2.1} parent=11 // pred_region
        _
      $region28: #{attention_neck2.1} parent=11 // pred_fallthru
        _
      // Predicated region
      $region29: #{attention_neck2.1} parent=11 // pred_check
        %p459 = pneg %p181
      $region30: #{attention_neck2.1} parent=11 // pred_check_branch
        %461 = sbr.rel (%p459) target = $region32
      $region31: #{attention_neck2.1} parent=11 // pred_region
        _
      $region32: #{attention_neck2.1} parent=11 // pred_fallthru
        _
      // Predicated region
      $region33: #{attention_neck2.1} parent=11 // pred_check
        %p462 = pneg %p202
      $region34: #{attention_neck2.1} parent=11 // pred_check_branch
        %464 = sbr.rel (%p462) target = $region36
      $region35: #{attention_neck2.1} parent=11 // pred_region
        _
      $region36: #{attention_neck2.1} parent=11 // pred_fallthru
        _
      // Predicated region
      $region37: #{attention_neck2.1} parent=11 // pred_check
        %p465 = pneg %p223
      $region38: #{attention_neck2.1} parent=11 // pred_check_branch
        %467 = sbr.rel (%p465) target = $region40
      $region39: #{attention_neck2.1} parent=11 // pred_region
        _
      $region40: #{attention_neck2.1} parent=11 // pred_fallthru
        _
      // Predicated region
      $region41: #{attention_neck2.1} parent=11 // pred_check
        %p468 = pneg %p244
      $region42: #{attention_neck2.1} parent=11 // pred_check_branch
        %470 = sbr.rel (%p468) target = $region44
      $region43: #{attention_neck2.1} parent=11 // pred_region
        _
      $region44: #{attention_neck2.1} parent=11 // pred_fallthru
        _
      // Predicated region
      $region45: #{attention_neck2.1} parent=11 // pred_check
        %p471 = pneg %p291
      $region46: #{attention_neck2.1} parent=11 // pred_check_branch
        %473 = sbr.rel (%p471) target = $region48
      $region47: #{attention_neck2.1} parent=11 // pred_region
        _
      $region48: #{attention_neck2.1} parent=11 // pred_fallthru
        _
      // Predicated region
      $region49: #{attention_neck2.1} parent=11 // pred_check
        %p474 = pneg %p312
      $region50: #{attention_neck2.1} parent=11 // pred_check_branch
        %476 = sbr.rel (%p474) target = $region52
      $region51: #{attention_neck2.1} parent=11 // pred_region
        _
      $region52: #{attention_neck2.1} parent=11 // pred_fallthru
        _
      // Predicated region
      $region53: #{attention_neck2.1} parent=11 // pred_check
        %p477 = pneg %p333
      $region54: #{attention_neck2.1} parent=11 // pred_check_branch
        %479 = sbr.rel (%p477) target = $region56
      $region55: #{attention_neck2.1} parent=11 // pred_region
        _
      $region56: #{attention_neck2.1} parent=11 // pred_fallthru
        _
      // Predicated region
      $region57: #{attention_neck2.1} parent=11 // pred_check
        %p480 = pneg %p354
      $region58: #{attention_neck2.1} parent=11 // pred_check_branch
        %482 = sbr.rel (%p480) target = $region60
      $region59: #{attention_neck2.1} parent=11 // pred_region
        _
      $region60: #{attention_neck2.1} parent=11 // pred_fallthru
        _
    $region12: #{attention_neck2.1} parent=5 // pred_fallthru
      _
    %p483 = scmp.lt.s32.totalorder %s24, 2
    // Predicated region
    $region61: #{attention_neck2.1} parent=5 // pred_check
      %p484 = pneg %p483
    $region62: #{attention_neck2.1} parent=5 // pred_check_branch
      %486 = sbr.rel (%p484) target = $region64
    $region63: #{attention_neck2.1} parent=5 // pred_region
      // Predicated region
      $region65: #{attention_neck2.1} parent=63 // pred_check
        %p487 = pneg %p44
      $region66: #{attention_neck2.1} parent=63 // pred_check_branch
        %489 = sbr.rel (%p487) target = $region68
      $region67: #{attention_neck2.1} parent=63 // pred_region
        %p490 = scmp.lt.s32.totalorder %s24, 1
        %s491 = scalar_select %p490, %s24, 1
        %s492 = smul.addr %s491, 4
        %s493 = smul.addr %s492, 8
        %s494 = scalar_lea.vmem %s0, %s493
      $region68: #{attention_neck2.1} parent=63 // pred_fallthru
        _
      // Predicated region
      $region69: #{attention_neck2.1} parent=63 // pred_check
        %p495 = pneg %p154
      $region70: #{attention_neck2.1} parent=63 // pred_check_branch
        %497 = sbr.rel (%p495) target = $region72
      $region71: #{attention_neck2.1} parent=63 // pred_region
        %p498 = scmp.lt.s32.totalorder %s24, 1
        %s499 = scalar_select %p498, %s24, 1
        %s500 = smul.addr %s499, 4
        %s501 = smul.addr %s500, 8
        %s502 = scalar_lea.vmem %s5, %s501
      $region72: #{attention_neck2.1} parent=63 // pred_fallthru
        _
      // Predicated region
      $region73: #{attention_neck2.1} parent=63 // pred_check
        %p503 = pneg %p264
      $region74: #{attention_neck2.1} parent=63 // pred_check_branch
        %505 = sbr.rel (%p503) target = $region76
      $region75: #{attention_neck2.1} parent=63 // pred_region
        %p506 = scmp.lt.s32.totalorder %s24, 1
        %s507 = scalar_select %p506, %s24, 1
        %s508 = smul.addr %s507, 8
        %s509 = smul.addr %s508, 8
        %s510 = scalar_lea.vmem %s10, %s509
      $region76: #{attention_neck2.1} parent=63 // pred_fallthru
        _
    $region64: #{attention_neck2.1} parent=5 // pred_fallthru
      _
    %p511 = scmp.le.s32.totalorder 1, %s24
    %p512 = scmp.lt.s32.totalorder %s24, 3
    %p513 = pnand %p511, %p512
    %p514 = pneg %p513
    // Predicated region
    $region77: #{attention_neck2.1} parent=5 // pred_check
      _
    $region78: #{attention_neck2.1} parent=5 // pred_check_branch
      %516 = sbr.rel (%p513) target = $region80
    $region79: #{attention_neck2.1} parent=5 // pred_region
      %s517 = ssub.s32 %s24, 1
      %p518 = scmp.lt.s32.totalorder %s29, 1
      %s519 = scalar_select %p518, %s29, 1
      %s520 = smul.addr %s519, 4
      %s521 = smul.addr %s520, 8
      %s522 = scalar_lea.vmem %s0, %s521
      %p523 = pneg %p50
      %p524 = pneg %p47
      %p525 = pneg %p71
      %p526 = pneg %p68
      %p527 = pneg %p92
      %p528 = pneg %p89
      %p529 = pneg %p113
      %p530 = pneg %p110
      %p531 = pneg %p134
      %p532 = pneg %p131
      %p533 = scmp.lt.s32.totalorder %s29, 1
      %s534 = scalar_select %p533, %s29, 1
      %s535 = smul.addr %s534, 4
      %s536 = smul.addr %s535, 8
      %s537 = scalar_lea.vmem %s5, %s536
      %p538 = pneg %p160
      %p539 = pneg %p157
      %p540 = pneg %p181
      %p541 = pneg %p178
      %p542 = pneg %p202
      %p543 = pneg %p199
      %p544 = pneg %p223
      %p545 = pneg %p220
      %p546 = pneg %p244
      %p547 = pneg %p241
      %p548 = scmp.lt.s32.totalorder %s29, 1
      %s549 = scalar_select %p548, %s29, 1
      %s550 = smul.addr %s549, 8
      %s551 = smul.addr %s550, 8
      %s552 = scalar_lea.vmem %s10, %s551
      %p553 = pneg %p270
      %p554 = pneg %p267
      %p555 = pneg %p291
      %p556 = pneg %p288
      %p557 = pneg %p312
      %p558 = pneg %p309
      %p559 = pneg %p333
      %p560 = pneg %p330
      %p561 = pneg %p354
      %p562 = pneg %p351
      %p563 = pneg %p380
      %p564 = pneg %p377
      %p565 = scmp.lt.s32.totalorder %s29, 1
      %s566 = scalar_select %p565, %s29, 1
      %s567 = smul.addr %s566, 4
      %s568 = smul.addr %s567, 8
      %s569 = scalar_lea.vmem %s15, %s568
      %p570 = pneg %p406
      %p571 = pneg %p403
      %p572 = scmp.lt.s32.totalorder %s29, 1
      %s573 = scalar_select %p572, %s29, 1
      %s574 = smul.addr %s573, 4
      %s575 = smul.addr %s574, 8
      %s576 = scalar_lea.vmem %s16, %s575
      %p577 = pneg %p432
      %p578 = pneg %p429
      %p579 = scmp.lt.s32.totalorder %s29, 1
      %s580 = scalar_select %p579, %s29, 1
      %s581 = smul.addr %s580, 8
      %s582 = smul.addr %s581, 8
      %s583 = scalar_lea.vmem %s17, %s582
      %p584 = scmp.lt.s32.totalorder %s29, 1
      %s585 = scalar_select %p584, %s29, 1
      %s586 = smul.addr %s585, 4
      %s587 = smul.addr %s586, 8
      %s588 = scalar_lea.vmem %s0, %s587
      %p589 = scmp.lt.s32.totalorder %s29, 1
      %s590 = scalar_select %p589, %s29, 1
      %s591 = smul.addr %s590, 4
      %s592 = smul.addr %s591, 8
      %s593 = scalar_lea.vmem %s5, %s592
      %p594 = scmp.lt.s32.totalorder %s29, 1
      %s595 = scalar_select %p594, %s29, 1
      %s596 = smul.addr %s595, 8
      %s597 = smul.addr %s596, 8
      %s598 = scalar_lea.vmem %s10, %s597
      %p599 = scmp.lt.s32.totalorder %s29, 1
      %s600 = scalar_select %p599, %s29, 1
      %s601 = smul.addr %s600, 4
      %s602 = smul.addr %s601, 8
      %s603 = scalar_lea.vmem %s15, %s602
      %p604 = scmp.lt.s32.totalorder %s29, 1
      %s605 = scalar_select %p604, %s29, 1
      %s606 = smul.addr %s605, 4
      %s607 = smul.addr %s606, 8
      %s608 = scalar_lea.vmem %s16, %s607
      %p609 = scmp.lt.s32.totalorder %s29, 1
      %s610 = scalar_select %p609, %s29, 1
      %s611 = smul.addr %s610, 8
      %s612 = smul.addr %s611, 8
      %s613 = scalar_lea.vmem %s17, %s612
      %v614 = vld [vmem:[%s598] sm:$0xff]
      %v615 = vld [vmem:[%s598 + $0x8] sm:$0xff]
      %v616 = vld [vmem:[%s598 + $0x10] sm:$0xff]
      %v617 = vld [vmem:[%s598 + $0x18] sm:$0xff]
      %v618 = vld [vmem:[%s598 + $0x20] sm:$0xff]
      %v619 = vld [vmem:[%s598 + $0x28] sm:$0xff]
      %v620 = vld [vmem:[%s598 + $0x30] sm:$0xff]
      %v621 = vld [vmem:[%s598 + $0x38] sm:$0xff]
      %vm622 = vcmask 130048
      %v624 = vsel %vm622, %v614, 0
      %v627 = vsel %vm622, %v615, 0
      %v630 = vsel %vm622, %v616, 0
      %v633 = vsel %vm622, %v617, 0
      %v636 = vsel %vm622, %v618, 0
      %v639 = vsel %vm622, %v619, 0
      %v642 = vsel %vm622, %v620, 0
      %v645 = vsel %vm622, %v621, 0
      %647 = vmatpush.msra.mxu0 0.0
      %648 = vmatpush.msra.mxu0 0.0
      %649 = vmatpush.msra.mxu0 0.0
      %650 = vmatpush.msra.mxu0 0.0
      %651 = vmatpush.msra.mxu0 0.0
      %652 = vmatpush.msra.mxu0 0.0
      %653 = vmatpush.msra.mxu0 0.0
      %654 = vmatpush.msra.mxu0 0.0
      %655 = vmatpush.msra.mxu0 0.0
      %656 = vmatpush.msra.mxu0 0.0
      %657 = vmatpush.msra.mxu0 0.0
      %658 = vmatpush.msra.mxu0 0.0
      %659 = vmatpush.msra.mxu0 0.0
      %660 = vmatpush.msra.mxu0 0.0
      %661 = vmatpush.msra.mxu0 1.0
      %662 = vmatpush.msra.mxu0 1.0
      %663 = vmatmul.f32.gmra.mxu0 %v624
      %v664 = vpop.f32.mrf.mxu0
      %v665 = vadd.f32 0.0, %v664
      %666 = vmatmul.f32.gmra.mxu0 %v627
      %v667 = vpop.f32.mrf.mxu0
      %v668 = vadd.f32 0.0, %v667
      %669 = vmatmul.f32.gmra.mxu0 %v630
      %v670 = vpop.f32.mrf.mxu0
      %v671 = vadd.f32 0.0, %v670
      %672 = vmatmul.f32.gmra.mxu0 %v633
      %v673 = vpop.f32.mrf.mxu0
      %v674 = vadd.f32 0.0, %v673
      %675 = vmatmul.f32.gmra.mxu0 %v636
      %v676 = vpop.f32.mrf.mxu0
      %v677 = vadd.f32 0.0, %v676
      %678 = vmatmul.f32.gmra.mxu0 %v639
      %v679 = vpop.f32.mrf.mxu0
      %v680 = vadd.f32 0.0, %v679
      %681 = vmatmul.f32.gmra.mxu0 %v642
      %v682 = vpop.f32.mrf.mxu0
      %v683 = vadd.f32 0.0, %v682
      %684 = vmatmul.f32.gmra.mxu0 %v645
      %v685 = vpop.f32.mrf.mxu0
      %v686 = vadd.f32 0.0, %v685
      %687 = vdwg.mxu0
      %v688 = vmul.f32 %v665, 0.0625
      %v689 = vmul.f32 %v668, 0.0625
      %v690 = vmul.f32 %v671, 0.0625
      %v691 = vmul.f32 %v674, 0.0625
      %v692 = vmul.f32 %v677, 0.0625
      %v693 = vmul.f32 %v680, 0.0625
      %v694 = vmul.f32 %v683, 0.0625
      %v695 = vmul.f32 %v686, 0.0625
      %v696 = vld [vmem:[%s11] sm:$0xff]
      %v697 = vld [vmem:[%s11 + $0x8] sm:$0xff]
      %v698 = vld [vmem:[%s11 + $0x10] sm:$0xff]
      %v699 = vld [vmem:[%s11 + $0x18] sm:$0xff]
      %v700 = vld [vmem:[%s12] sm:$0xff]
      %v701 = vld [vmem:[%s12 + $0x8] sm:$0xff]
      %v702 = vld [vmem:[%s12 + $0x10] sm:$0xff]
      %v703 = vld [vmem:[%s12 + $0x18] sm:$0xff]
      %vm704 = vcmask 523264
      %v706 = vsel %vm704, %v696, 0
      %v709 = vsel %vm704, %v697, 0
      %v712 = vsel %vm704, %v698, 0
      %v715 = vsel %vm704, %v699, 0
      %717 = vmatpush.msra.mxu0 0.0
      %718 = vmatpush.msra.mxu0 0.0
      %719 = vmatpush.msra.mxu0 0.0
      %720 = vmatpush.msra.mxu0 0.0
      %721 = vmatpush.msra.mxu0 0.0
      %722 = vmatpush.msra.mxu0 0.0
      %723 = vmatpush.msra.mxu0 0.0
      %724 = vmatpush.msra.mxu0 0.0
      %725 = vmatpush.msra.mxu0 %v695
      %726 = vmatpush.msra.mxu0 %v694
      %727 = vmatpush.msra.mxu0 %v693
      %728 = vmatpush.msra.mxu0 %v692
      %729 = vmatpush.msra.mxu0 %v691
      %730 = vmatpush.msra.mxu0 %v690
      %731 = vmatpush.msra.mxu0 %v689
      %732 = vmatpush.msra.mxu0 %v688
      %733 = vmatmul.f32.gmra.mxu0 %v706
      %v734 = vpop.f32.mrf.mxu0
      %v735 = vadd.f32 %v700, %v734
      %736 = vmatmul.f32.gmra.mxu0 %v709
      %v737 = vpop.f32.mrf.mxu0
      %v738 = vadd.f32 %v701, %v737
      %739 = vmatmul.f32.gmra.mxu0 %v712
      %v740 = vpop.f32.mrf.mxu0
      %v741 = vadd.f32 %v702, %v740
      %742 = vmatmul.f32.gmra.mxu0 %v715
      %v743 = vpop.f32.mrf.mxu0
      %v744 = vadd.f32 %v703, %v743
      %745 = vdwg.mxu0
      %v746 = vld [vmem:[%s13] sm:$0xff]
      %v747 = vld [vmem:[%s13 + $0x8] sm:$0xff]
      %v748 = vld [vmem:[%s13 + $0x10] sm:$0xff]
      %v749 = vld [vmem:[%s13 + $0x18] sm:$0xff]
      %v750 = vld [vmem:[%s13 + $0x20] sm:$0xff]
      %v751 = vld [vmem:[%s13 + $0x28] sm:$0xff]
      %v752 = vld [vmem:[%s13 + $0x30] sm:$0xff]
      %v753 = vld [vmem:[%s13 + $0x38] sm:$0xff]
      %v754 = vld [vmem:[%s14] sm:$0xff]
      %v755 = vld [vmem:[%s14 + $0x8] sm:$0xff]
      %v756 = vld [vmem:[%s14 + $0x10] sm:$0xff]
      %v757 = vld [vmem:[%s14 + $0x18] sm:$0xff]
      %v758 = vld [vmem:[%s14 + $0x20] sm:$0xff]
      %v759 = vld [vmem:[%s14 + $0x28] sm:$0xff]
      %v760 = vld [vmem:[%s14 + $0x30] sm:$0xff]
      %v761 = vld [vmem:[%s14 + $0x38] sm:$0xff]
      %vm762 = vcmask 261120
      %v764 = vsel %vm762, %v746, 0
      %v767 = vsel %vm762, %v747, 0
      %v770 = vsel %vm762, %v748, 0
      %v773 = vsel %vm762, %v749, 0
      %v776 = vsel %vm762, %v750, 0
      %v779 = vsel %vm762, %v751, 0
      %v782 = vsel %vm762, %v752, 0
      %v785 = vsel %vm762, %v753, 0
      %787 = vmatpush.msra.mxu0 0.0
      %788 = vmatpush.msra.mxu0 0.0
      %789 = vmatpush.msra.mxu0 0.0
      %790 = vmatpush.msra.mxu0 0.0
      %791 = vmatpush.msra.mxu0 0.0
      %792 = vmatpush.msra.mxu0 0.0
      %793 = vmatpush.msra.mxu0 0.0
      %794 = vmatpush.msra.mxu0 0.0
      %795 = vmatpush.msra.mxu0 0.0
      %796 = vmatpush.msra.mxu0 0.0
      %797 = vmatpush.msra.mxu0 0.0
      %798 = vmatpush.msra.mxu0 0.0
      %799 = vmatpush.msra.mxu0 %v744
      %800 = vmatpush.msra.mxu0 %v741
      %801 = vmatpush.msra.mxu0 %v738
      %802 = vmatpush.msra.mxu0 %v735
      %803 = vmatmul.f32.gmra.mxu0 %v764
      %v804 = vpop.f32.mrf.mxu0
      %v805 = vadd.f32 %v754, %v804
      %806 = vmatmul.f32.gmra.mxu0 %v767
      %v807 = vpop.f32.mrf.mxu0
      %v808 = vadd.f32 %v755, %v807
      %809 = vmatmul.f32.gmra.mxu0 %v770
      %v810 = vpop.f32.mrf.mxu0
      %v811 = vadd.f32 %v756, %v810
      %812 = vmatmul.f32.gmra.mxu0 %v773
      %v813 = vpop.f32.mrf.mxu0
      %v814 = vadd.f32 %v757, %v813
      %815 = vmatmul.f32.gmra.mxu0 %v776
      %v816 = vpop.f32.mrf.mxu0
      %v817 = vadd.f32 %v758, %v816
      %818 = vmatmul.f32.gmra.mxu0 %v779
      %v819 = vpop.f32.mrf.mxu0
      %v820 = vadd.f32 %v759, %v819
      %821 = vmatmul.f32.gmra.mxu0 %v782
      %v822 = vpop.f32.mrf.mxu0
      %v823 = vadd.f32 %v760, %v822
      %824 = vmatmul.f32.gmra.mxu0 %v785
      %v825 = vpop.f32.mrf.mxu0
      %v826 = vadd.f32 %v761, %v825
      %827 = vdwg.mxu0
      %v828 = vxor.u32 %v805, 2147483648
      %v829 = vxor.u32 %v808, 2147483648
      %v830 = vxor.u32 %v811, 2147483648
      %v831 = vxor.u32 %v814, 2147483648
      %v832 = vxor.u32 %v817, 2147483648
      %v833 = vxor.u32 %v820, 2147483648
      %v834 = vxor.u32 %v823, 2147483648
      %v835 = vxor.u32 %v826, 2147483648
      %v836 = vmul.f32 %v828, 1.442695
      %v837 = vpow.pop %v836
      %v838 = vmul.f32 %v829, 1.442695
      %v839 = vpow.pop %v838
      %v840 = vmul.f32 %v830, 1.442695
      %v841 = vpow.pop %v840
      %v842 = vmul.f32 %v831, 1.442695
      %v843 = vpow.pop %v842
      %v844 = vmul.f32 %v832, 1.442695
      %v845 = vpow.pop %v844
      %v846 = vmul.f32 %v833, 1.442695
      %v847 = vpow.pop %v846
      %v848 = vmul.f32 %v834, 1.442695
      %v849 = vpow.pop %v848
      %v850 = vmul.f32 %v835, 1.442695
      %v851 = vpow.pop %v850
      %v852 = vadd.f32 %v837, 1.0
      %v853 = vadd.f32 %v839, 1.0
      %v854 = vadd.f32 %v841, 1.0
      %v855 = vadd.f32 %v843, 1.0
      %v856 = vadd.f32 %v845, 1.0
      %v857 = vadd.f32 %v847, 1.0
      %v858 = vadd.f32 %v849, 1.0
      %v859 = vadd.f32 %v851, 1.0
      %v860 = vrcp.pop %v852
      %v861 = vmul.f32 %v852, %v860
      %v862 = vsub.f32 1.0, %v861
      %v863 = vmul.f32 %v860, %v862
      %v864 = vadd.f32 %v860, %v863
      %vm865 = vweird.f32 %v852
      %vm866 = vweird.f32 %v860
      %vm867 = vmor %vm865, %vm866
      %v868 = vsel %vm867, %v860, %v864
      %v869 = vand.u32 2147483647, %v852
      %vm870 = vcmp.eq.f32.partialorder %v869, 8.507059e+37
      %v871 = vand.u32 %v852, 2147483648
      %v872 = vor.u32 1.1754944e-38, %v871
      %v873 = vsel %vm870, %v872, %v868
      %v874 = vmul.f32 1.0, %v873
      %v875 = vrcp.pop %v853
      %v876 = vmul.f32 %v853, %v875
      %v877 = vsub.f32 1.0, %v876
      %v878 = vmul.f32 %v875, %v877
      %v879 = vadd.f32 %v875, %v878
      %vm880 = vweird.f32 %v853
      %vm881 = vweird.f32 %v875
      %vm882 = vmor %vm880, %vm881
      %v883 = vsel %vm882, %v875, %v879
      %v884 = vand.u32 2147483647, %v853
      %vm885 = vcmp.eq.f32.partialorder %v884, 8.507059e+37
      %v886 = vand.u32 %v853, 2147483648
      %v887 = vor.u32 1.1754944e-38, %v886
      %v888 = vsel %vm885, %v887, %v883
      %v889 = vmul.f32 1.0, %v888
      %v890 = vrcp.pop %v854
      %v891 = vmul.f32 %v854, %v890
      %v892 = vsub.f32 1.0, %v891
      %v893 = vmul.f32 %v890, %v892
      %v894 = vadd.f32 %v890, %v893
      %vm895 = vweird.f32 %v854
      %vm896 = vweird.f32 %v890
      %vm897 = vmor %vm895, %vm896
      %v898 = vsel %vm897, %v890, %v894
      %v899 = vand.u32 2147483647, %v854
      %vm900 = vcmp.eq.f32.partialorder %v899, 8.507059e+37
      %v901 = vand.u32 %v854, 2147483648
      %v902 = vor.u32 1.1754944e-38, %v901
      %v903 = vsel %vm900, %v902, %v898
      %v904 = vmul.f32 1.0, %v903
      %v905 = vrcp.pop %v855
      %v906 = vmul.f32 %v855, %v905
      %v907 = vsub.f32 1.0, %v906
      %v908 = vmul.f32 %v905, %v907
      %v909 = vadd.f32 %v905, %v908
      %vm910 = vweird.f32 %v855
      %vm911 = vweird.f32 %v905
      %vm912 = vmor %vm910, %vm911
      %v913 = vsel %vm912, %v905, %v909
      %v914 = vand.u32 2147483647, %v855
      %vm915 = vcmp.eq.f32.partialorder %v914, 8.507059e+37
      %v916 = vand.u32 %v855, 2147483648
      %v917 = vor.u32 1.1754944e-38, %v916
      %v918 = vsel %vm915, %v917, %v913
      %v919 = vmul.f32 1.0, %v918
      %v920 = vrcp.pop %v856
      %v921 = vmul.f32 %v856, %v920
      %v922 = vsub.f32 1.0, %v921
      %v923 = vmul.f32 %v920, %v922
      %v924 = vadd.f32 %v920, %v923
      %vm925 = vweird.f32 %v856
      %vm926 = vweird.f32 %v920
      %vm927 = vmor %vm925, %vm926
      %v928 = vsel %vm927, %v920, %v924
      %v929 = vand.u32 2147483647, %v856
      %vm930 = vcmp.eq.f32.partialorder %v929, 8.507059e+37
      %v931 = vand.u32 %v856, 2147483648
      %v932 = vor.u32 1.1754944e-38, %v931
      %v933 = vsel %vm930, %v932, %v928
      %v934 = vmul.f32 1.0, %v933
      %v935 = vrcp.pop %v857
      %v936 = vmul.f32 %v857, %v935
      %v937 = vsub.f32 1.0, %v936
      %v938 = vmul.f32 %v935, %v937
      %v939 = vadd.f32 %v935, %v938
      %vm940 = vweird.f32 %v857
      %vm941 = vweird.f32 %v935
      %vm942 = vmor %vm940, %vm941
      %v943 = vsel %vm942, %v935, %v939
      %v944 = vand.u32 2147483647, %v857
      %vm945 = vcmp.eq.f32.partialorder %v944, 8.507059e+37
      %v946 = vand.u32 %v857, 2147483648
      %v947 = vor.u32 1.1754944e-38, %v946
      %v948 = vsel %vm945, %v947, %v943
      %v949 = vmul.f32 1.0, %v948
      %v950 = vrcp.pop %v858
      %v951 = vmul.f32 %v858, %v950
      %v952 = vsub.f32 1.0, %v951
      %v953 = vmul.f32 %v950, %v952
      %v954 = vadd.f32 %v950, %v953
      %vm955 = vweird.f32 %v858
      %vm956 = vweird.f32 %v950
      %vm957 = vmor %vm955, %vm956
      %v958 = vsel %vm957, %v950, %v954
      %v959 = vand.u32 2147483647, %v858
      %vm960 = vcmp.eq.f32.partialorder %v959, 8.507059e+37
      %v961 = vand.u32 %v858, 2147483648
      %v962 = vor.u32 1.1754944e-38, %v961
      %v963 = vsel %vm960, %v962, %v958
      %v964 = vmul.f32 1.0, %v963
      %v965 = vrcp.pop %v859
      %v966 = vmul.f32 %v859, %v965
      %v967 = vsub.f32 1.0, %v966
      %v968 = vmul.f32 %v965, %v967
      %v969 = vadd.f32 %v965, %v968
      %vm970 = vweird.f32 %v859
      %vm971 = vweird.f32 %v965
      %vm972 = vmor %vm970, %vm971
      %v973 = vsel %vm972, %v965, %v969
      %v974 = vand.u32 2147483647, %v859
      %vm975 = vcmp.eq.f32.partialorder %v974, 8.507059e+37
      %v976 = vand.u32 %v859, 2147483648
      %v977 = vor.u32 1.1754944e-38, %v976
      %v978 = vsel %vm975, %v977, %v973
      %v979 = vmul.f32 1.0, %v978
      %981 = vset.pattern.permute.xlu0 0
      %982 = vperm.xlu0 %981, %v874
      %v983 = vpop.permute.xlu0 %982
      %986 = vset.pattern.permute.xlu0 0
      %987 = vperm.xlu0 %986, %v889
      %v988 = vpop.permute.xlu0 %987
      %991 = vset.pattern.permute.xlu0 0
      %992 = vperm.xlu0 %991, %v904
      %v993 = vpop.permute.xlu0 %992
      %996 = vset.pattern.permute.xlu0 0
      %997 = vperm.xlu0 %996, %v919
      %v998 = vpop.permute.xlu0 %997
      %1001 = vset.pattern.permute.xlu0 0
      %1002 = vperm.xlu0 %1001, %v934
      %v1003 = vpop.permute.xlu0 %1002
      %1006 = vset.pattern.permute.xlu0 0
      %1007 = vperm.xlu0 %1006, %v949
      %v1008 = vpop.permute.xlu0 %1007
      %1011 = vset.pattern.permute.xlu0 0
      %1012 = vperm.xlu0 %1011, %v964
      %v1013 = vpop.permute.xlu0 %1012
      %1016 = vset.pattern.permute.xlu0 0
      %1017 = vperm.xlu0 %1016, %v979
      %v1018 = vpop.permute.xlu0 %1017
      %v1020 = vmul.f32 %v614, %v983
      %v1021 = vmul.f32 %v615, %v988
      %v1022 = vmul.f32 %v616, %v993
      %v1023 = vmul.f32 %v617, %v998
      %v1024 = vmul.f32 %v618, %v1003
      %v1025 = vmul.f32 %v619, %v1008
      %v1026 = vmul.f32 %v620, %v1013
      %v1027 = vmul.f32 %v621, %v1018
      %1028 = vst.msk [vmem:[%s613] sm:$0xff] %vm622, %v1020
      %1029 = vst.msk [vmem:[%s613 + $0x8] sm:$0xff] %vm622, %v1021
      %1030 = vst.msk [vmem:[%s613 + $0x10] sm:$0xff] %vm622, %v1022
      %1031 = vst.msk [vmem:[%s613 + $0x18] sm:$0xff] %vm622, %v1023
      %1032 = vst.msk [vmem:[%s613 + $0x20] sm:$0xff] %vm622, %v1024
      %1033 = vst.msk [vmem:[%s613 + $0x28] sm:$0xff] %vm622, %v1025
      %1034 = vst.msk [vmem:[%s613 + $0x30] sm:$0xff] %vm622, %v1026
      %1035 = vst.msk [vmem:[%s613 + $0x38] sm:$0xff] %vm622, %v1027
      %v1036 = vld [vmem:[%s593] sm:$0xff]
      %v1037 = vld [vmem:[%s593 + $0x8] sm:$0xff]
      %v1038 = vld [vmem:[%s593 + $0x10] sm:$0xff]
      %v1039 = vld [vmem:[%s593 + $0x18] sm:$0xff]
      %v1041 = vsel %vm704, %v1036, 0
      %v1044 = vsel %vm704, %v1037, 0
      %v1047 = vsel %vm704, %v1038, 0
      %v1050 = vsel %vm704, %v1039, 0
      %1052 = vmatpush.msra.mxu0 0.0
      %1053 = vmatpush.msra.mxu0 0.0
      %1054 = vmatpush.msra.mxu0 0.0
      %1055 = vmatpush.msra.mxu0 0.0
      %1056 = vmatpush.msra.mxu0 0.0
      %1057 = vmatpush.msra.mxu0 0.0
      %1058 = vmatpush.msra.mxu0 0.0
      %1059 = vmatpush.msra.mxu0 0.0
      %1060 = vmatpush.msra.mxu0 1.0
      %1061 = vmatpush.msra.mxu0 1.0
      %1062 = vmatpush.msra.mxu0 1.0
      %1063 = vmatpush.msra.mxu0 1.0
      %1064 = vmatpush.msra.mxu0 1.0
      %1065 = vmatpush.msra.mxu0 1.0
      %1066 = vmatpush.msra.mxu0 1.0
      %1067 = vmatpush.msra.mxu0 1.0
      %1068 = vmatmul.f32.gmra.mxu0 %v1041
      %v1069 = vpop.f32.mrf.mxu0
      %v1070 = vadd.f32 0.0, %v1069
      %1071 = vmatmul.f32.gmra.mxu0 %v1044
      %v1072 = vpop.f32.mrf.mxu0
      %v1073 = vadd.f32 0.0, %v1072
      %1074 = vmatmul.f32.gmra.mxu0 %v1047
      %v1075 = vpop.f32.mrf.mxu0
      %v1076 = vadd.f32 0.0, %v1075
      %1077 = vmatmul.f32.gmra.mxu0 %v1050
      %v1078 = vpop.f32.mrf.mxu0
      %v1079 = vadd.f32 0.0, %v1078
      %1080 = vdwg.mxu0
      %v1081 = vmul.f32 %v1070, 0.015625
      %v1082 = vmul.f32 %v1073, 0.015625
      %v1083 = vmul.f32 %v1076, 0.015625
      %v1084 = vmul.f32 %v1079, 0.015625
      %v1085 = vld [vmem:[%s6] sm:$0xff]
      %v1086 = vld [vmem:[%s6 + $0x8] sm:$0xff]
      %v1087 = vld [vmem:[%s7] sm:$0xff]
      %v1088 = vld [vmem:[%s7 + $0x8] sm:$0xff]
      %v1090 = vsel %vm762, %v1085, 0
      %v1093 = vsel %vm762, %v1086, 0
      %1095 = vmatpush.msra.mxu0 0.0
      %1096 = vmatpush.msra.mxu0 0.0
      %1097 = vmatpush.msra.mxu0 0.0
      %1098 = vmatpush.msra.mxu0 0.0
      %1099 = vmatpush.msra.mxu0 0.0
      %1100 = vmatpush.msra.mxu0 0.0
      %1101 = vmatpush.msra.mxu0 0.0
      %1102 = vmatpush.msra.mxu0 0.0
      %1103 = vmatpush.msra.mxu0 0.0
      %1104 = vmatpush.msra.mxu0 0.0
      %1105 = vmatpush.msra.mxu0 0.0
      %1106 = vmatpush.msra.mxu0 0.0
      %1107 = vmatpush.msra.mxu0 %v1084
      %1108 = vmatpush.msra.mxu0 %v1083
      %1109 = vmatpush.msra.mxu0 %v1082
      %1110 = vmatpush.msra.mxu0 %v1081
      %1111 = vmatmul.f32.gmra.mxu0 %v1090
      %v1112 = vpop.f32.mrf.mxu0
      %v1113 = vadd.f32 %v1087, %v1112
      %1114 = vmatmul.f32.gmra.mxu0 %v1093
      %v1115 = vpop.f32.mrf.mxu0
      %v1116 = vadd.f32 %v1088, %v1115
      %1117 = vdwg.mxu0
      %v1118 = vld [vmem:[%s8] sm:$0xff]
      %v1119 = vld [vmem:[%s8 + $0x8] sm:$0xff]
      %v1120 = vld [vmem:[%s8 + $0x10] sm:$0xff]
      %v1121 = vld [vmem:[%s8 + $0x18] sm:$0xff]
      %v1122 = vld [vmem:[%s9] sm:$0xff]
      %v1123 = vld [vmem:[%s9 + $0x8] sm:$0xff]
      %v1124 = vld [vmem:[%s9 + $0x10] sm:$0xff]
      %v1125 = vld [vmem:[%s9 + $0x18] sm:$0xff]
      %v1127 = vsel %vm622, %v1118, 0
      %v1130 = vsel %vm622, %v1119, 0
      %v1133 = vsel %vm622, %v1120, 0
      %v1136 = vsel %vm622, %v1121, 0
      %1138 = vmatpush.msra.mxu0 0.0
      %1139 = vmatpush.msra.mxu0 0.0
      %1140 = vmatpush.msra.mxu0 0.0
      %1141 = vmatpush.msra.mxu0 0.0
      %1142 = vmatpush.msra.mxu0 0.0
      %1143 = vmatpush.msra.mxu0 0.0
      %1144 = vmatpush.msra.mxu0 0.0
      %1145 = vmatpush.msra.mxu0 0.0
      %1146 = vmatpush.msra.mxu0 0.0
      %1147 = vmatpush.msra.mxu0 0.0
      %1148 = vmatpush.msra.mxu0 0.0
      %1149 = vmatpush.msra.mxu0 0.0
      %1150 = vmatpush.msra.mxu0 0.0
      %1151 = vmatpush.msra.mxu0 0.0
      %1152 = vmatpush.msra.mxu0 %v1116
      %1153 = vmatpush.msra.mxu0 %v1113
      %1154 = vmatmul.f32.gmra.mxu0 %v1127
      %v1155 = vpop.f32.mrf.mxu0
      %v1156 = vadd.f32 %v1122, %v1155
      %1157 = vmatmul.f32.gmra.mxu0 %v1130
      %v1158 = vpop.f32.mrf.mxu0
      %v1159 = vadd.f32 %v1123, %v1158
      %1160 = vmatmul.f32.gmra.mxu0 %v1133
      %v1161 = vpop.f32.mrf.mxu0
      %v1162 = vadd.f32 %v1124, %v1161
      %1163 = vmatmul.f32.gmra.mxu0 %v1136
      %v1164 = vpop.f32.mrf.mxu0
      %v1165 = vadd.f32 %v1125, %v1164
      %1166 = vdwg.mxu0
      %v1167 = vxor.u32 %v1156, 2147483648
      %v1168 = vxor.u32 %v1159, 2147483648
      %v1169 = vxor.u32 %v1162, 2147483648
      %v1170 = vxor.u32 %v1165, 2147483648
      %v1171 = vmul.f32 %v1167, 1.442695
      %v1172 = vpow.pop %v1171
      %v1173 = vmul.f32 %v1168, 1.442695
      %v1174 = vpow.pop %v1173
      %v1175 = vmul.f32 %v1169, 1.442695
      %v1176 = vpow.pop %v1175
      %v1177 = vmul.f32 %v1170, 1.442695
      %v1178 = vpow.pop %v1177
      %v1179 = vadd.f32 %v1172, 1.0
      %v1180 = vadd.f32 %v1174, 1.0
      %v1181 = vadd.f32 %v1176, 1.0
      %v1182 = vadd.f32 %v1178, 1.0
      %v1183 = vrcp.pop %v1179
      %v1184 = vmul.f32 %v1179, %v1183
      %v1185 = vsub.f32 1.0, %v1184
      %v1186 = vmul.f32 %v1183, %v1185
      %v1187 = vadd.f32 %v1183, %v1186
      %vm1188 = vweird.f32 %v1179
      %vm1189 = vweird.f32 %v1183
      %vm1190 = vmor %vm1188, %vm1189
      %v1191 = vsel %vm1190, %v1183, %v1187
      %v1192 = vand.u32 2147483647, %v1179
      %vm1193 = vcmp.eq.f32.partialorder %v1192, 8.507059e+37
      %v1194 = vand.u32 %v1179, 2147483648
      %v1195 = vor.u32 1.1754944e-38, %v1194
      %v1196 = vsel %vm1193, %v1195, %v1191
      %v1197 = vmul.f32 1.0, %v1196
      %v1198 = vrcp.pop %v1180
      %v1199 = vmul.f32 %v1180, %v1198
      %v1200 = vsub.f32 1.0, %v1199
      %v1201 = vmul.f32 %v1198, %v1200
      %v1202 = vadd.f32 %v1198, %v1201
      %vm1203 = vweird.f32 %v1180
      %vm1204 = vweird.f32 %v1198
      %vm1205 = vmor %vm1203, %vm1204
      %v1206 = vsel %vm1205, %v1198, %v1202
      %v1207 = vand.u32 2147483647, %v1180
      %vm1208 = vcmp.eq.f32.partialorder %v1207, 8.507059e+37
      %v1209 = vand.u32 %v1180, 2147483648
      %v1210 = vor.u32 1.1754944e-38, %v1209
      %v1211 = vsel %vm1208, %v1210, %v1206
      %v1212 = vmul.f32 1.0, %v1211
      %v1213 = vrcp.pop %v1181
      %v1214 = vmul.f32 %v1181, %v1213
      %v1215 = vsub.f32 1.0, %v1214
      %v1216 = vmul.f32 %v1213, %v1215
      %v1217 = vadd.f32 %v1213, %v1216
      %vm1218 = vweird.f32 %v1181
      %vm1219 = vweird.f32 %v1213
      %vm1220 = vmor %vm1218, %vm1219
      %v1221 = vsel %vm1220, %v1213, %v1217
      %v1222 = vand.u32 2147483647, %v1181
      %vm1223 = vcmp.eq.f32.partialorder %v1222, 8.507059e+37
      %v1224 = vand.u32 %v1181, 2147483648
      %v1225 = vor.u32 1.1754944e-38, %v1224
      %v1226 = vsel %vm1223, %v1225, %v1221
      %v1227 = vmul.f32 1.0, %v1226
      %v1228 = vrcp.pop %v1182
      %v1229 = vmul.f32 %v1182, %v1228
      %v1230 = vsub.f32 1.0, %v1229
      %v1231 = vmul.f32 %v1228, %v1230
      %v1232 = vadd.f32 %v1228, %v1231
      %vm1233 = vweird.f32 %v1182
      %vm1234 = vweird.f32 %v1228
      %vm1235 = vmor %vm1233, %vm1234
      %v1236 = vsel %vm1235, %v1228, %v1232
      %v1237 = vand.u32 2147483647, %v1182
      %vm1238 = vcmp.eq.f32.partialorder %v1237, 8.507059e+37
      %v1239 = vand.u32 %v1182, 2147483648
      %v1240 = vor.u32 1.1754944e-38, %v1239
      %v1241 = vsel %vm1238, %v1240, %v1236
      %v1242 = vmul.f32 1.0, %v1241
      %1244 = vset.pattern.permute.xlu0 0
      %1245 = vperm.xlu0 %1244, %v1197
      %v1246 = vpop.permute.xlu0 %1245
      %1249 = vset.pattern.permute.xlu0 0
      %1250 = vperm.xlu0 %1249, %v1212
      %v1251 = vpop.permute.xlu0 %1250
      %1254 = vset.pattern.permute.xlu0 0
      %1255 = vperm.xlu0 %1254, %v1227
      %v1256 = vpop.permute.xlu0 %1255
      %1259 = vset.pattern.permute.xlu0 0
      %1260 = vperm.xlu0 %1259, %v1242
      %v1261 = vpop.permute.xlu0 %1260
      %v1263 = vmul.f32 %v1036, %v1246
      %v1264 = vmul.f32 %v1037, %v1251
      %v1265 = vmul.f32 %v1038, %v1256
      %v1266 = vmul.f32 %v1039, %v1261
      %1267 = vst.msk [vmem:[%s608] sm:$0xff] %vm704, %v1263
      %1268 = vst.msk [vmem:[%s608 + $0x8] sm:$0xff] %vm704, %v1264
      %1269 = vst.msk [vmem:[%s608 + $0x10] sm:$0xff] %vm704, %v1265
      %1270 = vst.msk [vmem:[%s608 + $0x18] sm:$0xff] %vm704, %v1266
      %v1271 = vld [vmem:[%s588] sm:$0xff]
      %v1272 = vld [vmem:[%s588 + $0x8] sm:$0xff]
      %v1273 = vld [vmem:[%s588 + $0x10] sm:$0xff]
      %v1274 = vld [vmem:[%s588 + $0x18] sm:$0xff]
      %1275 = vmatpush.msra.mxu0 1.0
      %1276 = vmatpush.msra.mxu0 1.0
      %1277 = vmatpush.msra.mxu0 1.0
      %1278 = vmatpush.msra.mxu0 1.0
      %1279 = vmatpush.msra.mxu0 1.0
      %1280 = vmatpush.msra.mxu0 1.0
      %1281 = vmatpush.msra.mxu0 1.0
      %1282 = vmatpush.msra.mxu0 1.0
      %1283 = vmatpush.msra.mxu0 1.0
      %1284 = vmatpush.msra.mxu0 1.0
      %1285 = vmatpush.msra.mxu0 1.0
      %1286 = vmatpush.msra.mxu0 1.0
      %1287 = vmatpush.msra.mxu0 1.0
      %1288 = vmatpush.msra.mxu0 1.0
      %1289 = vmatpush.msra.mxu0 1.0
      %1290 = vmatpush.msra.mxu0 1.0
      %1291 = vmatmul.f32.gmra.mxu0 %v1271
      %v1292 = vpop.f32.mrf.mxu0
      %v1293 = vadd.f32 0.0, %v1292
      %1294 = vmatmul.f32.gmra.mxu0 %v1273
      %v1295 = vpop.f32.mrf.mxu0
      %v1296 = vadd.f32 0.0, %v1295
      %1297 = vdwg.mxu0
      %1298 = vmatpush.msra.mxu0 1.0
      %1299 = vmatpush.msra.mxu0 1.0
      %1300 = vmatpush.msra.mxu0 1.0
      %1301 = vmatpush.msra.mxu0 1.0
      %1302 = vmatpush.msra.mxu0 1.0
      %1303 = vmatpush.msra.mxu0 1.0
      %1304 = vmatpush.msra.mxu0 1.0
      %1305 = vmatpush.msra.mxu0 1.0
      %1306 = vmatpush.msra.mxu0 1.0
      %1307 = vmatpush.msra.mxu0 1.0
      %1308 = vmatpush.msra.mxu0 1.0
      %1309 = vmatpush.msra.mxu0 1.0
      %1310 = vmatpush.msra.mxu0 1.0
      %1311 = vmatpush.msra.mxu0 1.0
      %1312 = vmatpush.msra.mxu0 1.0
      %1313 = vmatpush.msra.mxu0 1.0
      %1314 = vmatmul.f32.gmra.mxu0 %v1272
      %v1315 = vpop.f32.mrf.mxu0
      %v1316 = vadd.f32 %v1293, %v1315
      %1317 = vmatmul.f32.gmra.mxu0 %v1274
      %v1318 = vpop.f32.mrf.mxu0
      %v1319 = vadd.f32 %v1296, %v1318
      %1320 = vdwg.mxu0
      %v1321 = vmul.f32 %v1316, 0.00390625
      %v1322 = vmul.f32 %v1319, 0.00390625
      %v1323 = vld [vmem:[%s1] sm:$0xff]
      %v1324 = vld [vmem:[%s2] sm:$0xff]
      %v1326 = vsel %vm622, %v1323, 0
      %1328 = vmatpush.msra.mxu0 0.0
      %1329 = vmatpush.msra.mxu0 0.0
      %1330 = vmatpush.msra.mxu0 0.0
      %1331 = vmatpush.msra.mxu0 0.0
      %1332 = vmatpush.msra.mxu0 0.0
      %1333 = vmatpush.msra.mxu0 0.0
      %1334 = vmatpush.msra.mxu0 0.0
      %1335 = vmatpush.msra.mxu0 0.0
      %1336 = vmatpush.msra.mxu0 0.0
      %1337 = vmatpush.msra.mxu0 0.0
      %1338 = vmatpush.msra.mxu0 0.0
      %1339 = vmatpush.msra.mxu0 0.0
      %1340 = vmatpush.msra.mxu0 0.0
      %1341 = vmatpush.msra.mxu0 0.0
      %1342 = vmatpush.msra.mxu0 %v1322
      %1343 = vmatpush.msra.mxu0 %v1321
      %1344 = vmatmul.f32.gmra.mxu0 %v1326
      %v1345 = vpop.f32.mrf.mxu0
      %v1346 = vadd.f32 %v1324, %v1345
      %1347 = vdwg.mxu0
      %v1348 = vld [vmem:[%s3] sm:$0xff]
      %v1349 = vld [vmem:[%s3 + $0x8] sm:$0xff]
      %v1350 = vld [vmem:[%s4] sm:$0xff]
      %v1351 = vld [vmem:[%s4 + $0x8] sm:$0xff]
      %vm1352 = vcmask 64512
      %v1354 = vsel %vm1352, %v1348, 0
      %v1357 = vsel %vm1352, %v1349, 0
      %1359 = vmatpush.msra.mxu0 0.0
      %1360 = vmatpush.msra.mxu0 0.0
      %1361 = vmatpush.msra.mxu0 0.0
      %1362 = vmatpush.msra.mxu0 0.0
      %1363 = vmatpush.msra.mxu0 0.0
      %1364 = vmatpush.msra.mxu0 0.0
      %1365 = vmatpush.msra.mxu0 0.0
      %1366 = vmatpush.msra.mxu0 0.0
      %1367 = vmatpush.msra.mxu0 0.0
      %1368 = vmatpush.msra.mxu0 0.0
      %1369 = vmatpush.msra.mxu0 0.0
      %1370 = vmatpush.msra.mxu0 0.0
      %1371 = vmatpush.msra.mxu0 0.0
      %1372 = vmatpush.msra.mxu0 0.0
      %1373 = vmatpush.msra.mxu0 0.0
      %1374 = vmatpush.msra.mxu0 %v1346
      %1375 = vmatmul.f32.gmra.mxu0 %v1354
      %v1376 = vpop.f32.mrf.mxu0
      %v1377 = vadd.f32 %v1350, %v1376
      %1378 = vmatmul.f32.gmra.mxu0 %v1357
      %v1379 = vpop.f32.mrf.mxu0
      %v1380 = vadd.f32 %v1351, %v1379
      %1381 = vdwg.mxu0
      %v1382 = vxor.u32 %v1377, 2147483648
      %v1383 = vxor.u32 %v1380, 2147483648
      %v1384 = vmul.f32 %v1382, 1.442695
      %v1385 = vpow.pop %v1384
      %v1386 = vmul.f32 %v1383, 1.442695
      %v1387 = vpow.pop %v1386
      %v1388 = vadd.f32 %v1385, 1.0
      %v1389 = vadd.f32 %v1387, 1.0
      %v1390 = vrcp.pop %v1388
      %v1391 = vmul.f32 %v1388, %v1390
      %v1392 = vsub.f32 1.0, %v1391
      %v1393 = vmul.f32 %v1390, %v1392
      %v1394 = vadd.f32 %v1390, %v1393
      %vm1395 = vweird.f32 %v1388
      %vm1396 = vweird.f32 %v1390
      %vm1397 = vmor %vm1395, %vm1396
      %v1398 = vsel %vm1397, %v1390, %v1394
      %v1399 = vand.u32 2147483647, %v1388
      %vm1400 = vcmp.eq.f32.partialorder %v1399, 8.507059e+37
      %v1401 = vand.u32 %v1388, 2147483648
      %v1402 = vor.u32 1.1754944e-38, %v1401
      %v1403 = vsel %vm1400, %v1402, %v1398
      %v1404 = vmul.f32 1.0, %v1403
      %v1405 = vrcp.pop %v1389
      %v1406 = vmul.f32 %v1389, %v1405
      %v1407 = vsub.f32 1.0, %v1406
      %v1408 = vmul.f32 %v1405, %v1407
      %v1409 = vadd.f32 %v1405, %v1408
      %vm1410 = vweird.f32 %v1389
      %vm1411 = vweird.f32 %v1405
      %vm1412 = vmor %vm1410, %vm1411
      %v1413 = vsel %vm1412, %v1405, %v1409
      %v1414 = vand.u32 2147483647, %v1389
      %vm1415 = vcmp.eq.f32.partialorder %v1414, 8.507059e+37
      %v1416 = vand.u32 %v1389, 2147483648
      %v1417 = vor.u32 1.1754944e-38, %v1416
      %v1418 = vsel %vm1415, %v1417, %v1413
      %v1419 = vmul.f32 1.0, %v1418
      %1421 = vset.pattern.permute.xlu0 0
      %1422 = vperm.xlu0 %1421, %v1404
      %v1423 = vpop.permute.xlu0 %1422
      %1426 = vset.pattern.permute.xlu0 0
      %1427 = vperm.xlu0 %1426, %v1419
      %v1428 = vpop.permute.xlu0 %1427
      %v1430 = vmul.f32 %v1271, %v1423
      %v1431 = vmul.f32 %v1272, %v1423
      %v1432 = vmul.f32 %v1273, %v1428
      %v1433 = vmul.f32 %v1274, %v1428
      %1434 = vst [vmem:[%s603] sm:$0xff] %v1430
      %1435 = vst [vmem:[%s603 + $0x8] sm:$0xff] %v1431
      %1436 = vst [vmem:[%s603 + $0x10] sm:$0xff] %v1432
      %1437 = vst [vmem:[%s603 + $0x18] sm:$0xff] %v1433
      %p1438 = scmp.lt.s32.totalorder %s29, 1
      %s1439 = scalar_select %p1438, %s29, 1
      %s1440 = smul.addr %s1439, 4
      %s1441 = smul.addr %s1440, 8
      %s1442 = scalar_lea.vmem %s15, %s1441
      %p1443 = scmp.lt.s32.totalorder %s29, 1
      %s1444 = scalar_select %p1443, %s29, 1
      %s1445 = smul.addr %s1444, 4
      %s1446 = smul.addr %s1445, 8
      %s1447 = scalar_lea.vmem %s16, %s1446
      %p1448 = scmp.lt.s32.totalorder %s29, 1
      %s1449 = scalar_select %p1448, %s29, 1
      %s1450 = smul.addr %s1449, 8
      %s1451 = smul.addr %s1450, 8
      %s1452 = scalar_lea.vmem %s17, %s1451
      // Predicated region
      $region81: #{attention_neck2.1} parent=79 // pred_check
        %p1453 = pneg %p377
      $region82: #{attention_neck2.1} parent=79 // pred_check_branch
        %1455 = sbr.rel (%p1453) target = $region84
      $region83: #{attention_neck2.1} parent=79 // pred_region
        _
      $region84: #{attention_neck2.1} parent=79 // pred_fallthru
        _
      // Predicated region
      $region85: #{attention_neck2.1} parent=79 // pred_check
        %p1456 = pneg %p403
      $region86: #{attention_neck2.1} parent=79 // pred_check_branch
        %1458 = sbr.rel (%p1456) target = $region88
      $region87: #{attention_neck2.1} parent=79 // pred_region
        _
      $region88: #{attention_neck2.1} parent=79 // pred_fallthru
        _
      // Predicated region
      $region89: #{attention_neck2.1} parent=79 // pred_check
        %p1459 = pneg %p429
      $region90: #{attention_neck2.1} parent=79 // pred_check_branch
        %1461 = sbr.rel (%p1459) target = $region92
      $region91: #{attention_neck2.1} parent=79 // pred_region
        _
      $region92: #{attention_neck2.1} parent=79 // pred_fallthru
        _
    $region80: #{attention_neck2.1} parent=5 // pred_fallthru
      _
    %p1462 = scmp.le.s32.totalorder 2, %s24
    // Predicated region
    $region93: #{attention_neck2.1} parent=5 // pred_check
      %p1463 = pneg %p1462
    $region94: #{attention_neck2.1} parent=5 // pred_check_branch
      %1465 = sbr.rel (%p1463) target = $region96
    $region95: #{attention_neck2.1} parent=5 // pred_region
      %s1466 = ssub.s32 %s24, 2
      // Predicated region
      $region97: #{attention_neck2.1} parent=95 // pred_check
        %p1467 = pneg %p383
      $region98: #{attention_neck2.1} parent=95 // pred_check_branch
        %1469 = sbr.rel (%p1467) target = $region100
      $region99: #{attention_neck2.1} parent=95 // pred_region
        %p1470 = scmp.lt.s32.totalorder %s30, 1
        %s1471 = scalar_select %p1470, %s30, 1
        %s1472 = smul.addr %s1471, 4
        %s1473 = smul.addr %s1472, 8
        %s1474 = scalar_lea.vmem %s15, %s1473
      $region100: #{attention_neck2.1} parent=95 // pred_fallthru
        _
      // Predicated region
      $region101: #{attention_neck2.1} parent=95 // pred_check
        %p1475 = pneg %p409
      $region102: #{attention_neck2.1} parent=95 // pred_check_branch
        %1477 = sbr.rel (%p1475) target = $region104
      $region103: #{attention_neck2.1} parent=95 // pred_region
        %p1478 = scmp.lt.s32.totalorder %s30, 1
        %s1479 = scalar_select %p1478, %s30, 1
        %s1480 = smul.addr %s1479, 4
        %s1481 = smul.addr %s1480, 8
        %s1482 = scalar_lea.vmem %s16, %s1481
      $region104: #{attention_neck2.1} parent=95 // pred_fallthru
        _
      // Predicated region
      $region105: #{attention_neck2.1} parent=95 // pred_check
        %p1483 = pneg %p435
      $region106: #{attention_neck2.1} parent=95 // pred_check_branch
        %1485 = sbr.rel (%p1483) target = $region108
      $region107: #{attention_neck2.1} parent=95 // pred_region
        %p1486 = scmp.lt.s32.totalorder %s30, 1
        %s1487 = scalar_select %p1486, %s30, 1
        %s1488 = smul.addr %s1487, 8
        %s1489 = smul.addr %s1488, 8
        %s1490 = scalar_lea.vmem %s17, %s1489
      $region108: #{attention_neck2.1} parent=95 // pred_fallthru
        _
    $region96: #{attention_neck2.1} parent=5 // pred_fallthru
      _
  $region6: #{attention_neck2.1} parent=0 // loop_footer
    %s28 = sadd.s32 1, %s24
  $region7: #{attention_neck2.1} parent=0 // loop_footer_branch
    %23 = sbr.rel target = $region3
  $region8: #{attention_neck2.1} parent=0 // loop_exit
    _

</llo_original>
